<compile_context>
chip_gen: v7x
topology: tpu7x:2x2x1
jax: 0.10.0
libtpu: 0.0.40
codegen_flags: <defaults>
</compile_context>

<pallas_src>
import functools
import math

import jax
import jax.numpy as jnp
from jax.experimental import pallas as pl
from jax.experimental.pallas import tpu as pltpu


LN_EPS = 1e-5


# --------------------------------------------------------------------------
# Hardware-dependent configuration
# --------------------------------------------------------------------------

@functools.lru_cache(maxsize=None)
def _tpu_config():
    """VMEM limit and tile targets sized per TPU generation."""
    vmem = 64 * 1024 * 1024                      # conservative default (v7x)
    try:
        info = pltpu.get_tpu_info()
        vmem = int(getattr(info, "vmem_capacity_bytes", vmem) or vmem)
    except Exception:
        pass
    big = vmem >= 100 * 1024 * 1024              # v5e / v6e: 128 MiB per core
    return dict(
        vmem_limit=min(int(vmem * 3 // 4), 112 * 1024 * 1024),
        lin_tm=512 if big else 256,
        lin_tn=512 if big else 256,
        lin_tk=512,
        ffn_tm=512 if big else 256,
        ffn_tf=512,
        attn_tq=512 if big else 256,
    )


_INVARIANT_MODE_CACHE = []


def _invariant_buffering():
    """pl.Buffered(1) for grid-invariant weight specs (halves their VMEM
    footprint vs. default double buffering — matters most on v7x's 64 MiB).
    A one-time probe compile falls back to None if unsupported."""
    if not _INVARIANT_MODE_CACHE:
        mode = None
        try:
            def _probe(x_ref, o_ref):
                o_ref[...] = x_ref[...] * 2.0

            fn = pl.pallas_call(
                _probe,
                grid=(2, 2),
                in_specs=[pl.BlockSpec((8, 128), lambda i, j: (0, 0),
                                       pipeline_mode=pl.Buffered(1))],
                out_specs=pl.BlockSpec((8, 128), lambda i, j: (i, j)),
                out_shape=jax.ShapeDtypeStruct((16, 256), jnp.float32),
                compiler_params=pltpu.CompilerParams(
                    dimension_semantics=("parallel", "arbitrary")),
            )
            jax.jit(fn).lower(
                jax.ShapeDtypeStruct((8, 128), jnp.float32)).compile()
            mode = pl.Buffered(1)
        except Exception:
            mode = None
        _INVARIANT_MODE_CACHE.append(mode)
    return _INVARIANT_MODE_CACHE[0]


def _pick_tile(dim, target, align):
    """Largest multiple of `align` that is <= target and divides dim.

    Falls back to the full dimension, which is always legal (full-extent
    blocks are exempt from the (8, 128) rule).
    TODO(synk): pad + pl.cdiv grids for awkward dims instead of a full block.
    """
    if dim <= target:
        return dim
    t = (target // align) * align
    while t >= align:
        if dim % t == 0:
            return t
        t -= align
    return dim


# --------------------------------------------------------------------------
# Kernel 1: tiled linear (+bias) — input embedding.
# --------------------------------------------------------------------------

def _linear_bias_kernel_single_k(x_ref, w_ref, b_ref, o_ref):
    # K fits one block (the embedding layer): no accumulator, direct store.
    o_ref[...] = (jnp.dot(x_ref[...], w_ref[...],
                          preferred_element_type=jnp.float32)
                  + b_ref[...]).astype(o_ref.dtype)


def _linear_bias_kernel_acc(x_ref, w_ref, b_ref, o_ref, acc_ref):
    k = pl.program_id(2)

    @pl.when(k == 0)
    def _():
        acc_ref[...] = jnp.zeros_like(acc_ref)

    acc_ref[...] += jnp.dot(x_ref[...], w_ref[...],
                            preferred_element_type=jnp.float32)

    @pl.when(k == pl.num_programs(2) - 1)
    def _():
        o_ref[...] = (acc_ref[...] + b_ref[...]).astype(o_ref.dtype)


def linear_bias(x, w, b, *, out_dtype, cfg):
    # x: (M, K) compute dtype, w: (K, N) compute dtype, b: (1, N) f32
    M, K = x.shape
    Nf = w.shape[1]
    tm = _pick_tile(M, cfg["lin_tm"], 8)
    tn = _pick_tile(Nf, cfg["lin_tn"], 128)
    tk = _pick_tile(K, cfg["lin_tk"], 128)
    kt = K // tk

    if kt == 1:
        return pl.pallas_call(
            _linear_bias_kernel_single_k,
            grid=(M // tm, Nf // tn),
            in_specs=[
                pl.BlockSpec((tm, K), lambda i, j: (i, 0)),
                pl.BlockSpec((K, tn), lambda i, j: (0, j)),
                pl.BlockSpec((1, tn), lambda i, j: (0, j)),
            ],
            out_specs=pl.BlockSpec((tm, tn), lambda i, j: (i, j)),
            out_shape=jax.ShapeDtypeStruct((M, Nf), out_dtype),
            compiler_params=pltpu.CompilerParams(
                dimension_semantics=("parallel", "parallel"),
                vmem_limit_bytes=cfg["vmem_limit"]),
        )(x, w, b)

    return pl.pallas_call(
        _linear_bias_kernel_acc,
        grid=(M // tm, Nf // tn, kt),
        in_specs=[
            pl.BlockSpec((tm, tk), lambda i, j, k: (i, k)),
            pl.BlockSpec((tk, tn), lambda i, j, k: (k, j)),
            pl.BlockSpec((1, tn), lambda i, j, k: (0, j)),
        ],
        out_specs=pl.BlockSpec((tm, tn), lambda i, j, k: (i, j)),
        out_shape=jax.ShapeDtypeStruct((M, Nf), out_dtype),
        scratch_shapes=[pltpu.VMEM((tm, tn), jnp.float32)],
        compiler_params=pltpu.CompilerParams(
            dimension_semantics=("parallel", "parallel", "arbitrary"),
            vmem_limit_bytes=cfg["vmem_limit"]),
    )(x, w, b)


# --------------------------------------------------------------------------
# Kernel 2: fused self-attention block
#   (QKV projection + per-head masked softmax + fc_out + residual + LN1)
#   grid = (batch ["parallel"], query tiles ["parallel"])
# --------------------------------------------------------------------------

def _attn_block_kernel(xq_ref, xkv_ref, m_ref, wq_ref, wkv_ref, fcw_ref,
                       fcb_ref, g_ref, b_ref, o_ref, *, heads, scale, eps, cd):
    xq = xq_ref[0]                          # (tq, E)  query / residual rows
    xkv = xkv_ref[0]                        # (L,  E)  key / value rows
    E = xq.shape[-1]
    Dh = E // heads

    # Hoisted out of the head loop: mask predicate + fill constant.  The
    # softmax scale 1/sqrt(E) is pre-folded into w_q, so the masked_fill value
    # becomes -1e20 * scale (PyTorch masks *before* dividing by sqrt(E)).
    mk0 = m_ref[0] == 0.0                   # (1, L) key-padding predicate
    neg = jnp.float32(-1e20 * scale)

    # Fused projections: f32 MXU accumulation, then one cast to bf16 so the
    # (tq,E)/(L,2E) values live at half width across the whole head loop.
    q_all = jnp.dot(xq, wq_ref[...],
                    preferred_element_type=jnp.float32).astype(cd)   # (tq, E)
    kv_all = jnp.dot(xkv, wkv_ref[...],
                     preferred_element_type=jnp.float32).astype(cd)  # (L, 2E)

    # Per-head attention; contexts collected as values (no scratch, no
    # lane-masked partial stores) and concatenated once before fc_out.
    ctxs = []
    for h in range(heads):
        lo = h * Dh
        qh = q_all[:, lo:lo + Dh]
        kh = kv_all[:, lo:lo + Dh]
        vh = kv_all[:, E + lo:E + lo + Dh]
        e = jax.lax.dot_general(qh, kh, (((1,), (1,)), ((), ())),
                                preferred_element_type=jnp.float32)   # (tq, L)
        e = jnp.where(mk0, neg, e)
        emax = jnp.max(e, axis=-1, keepdims=True)
        p = jnp.exp(e - emax)
        # TODO(synk): use approx=False if this path is reused for training.
        p = p * pl.reciprocal(jnp.sum(p, axis=-1, keepdims=True), approx=True)
        ctxs.append(jnp.dot(p.astype(cd), vh,
                            preferred_element_type=jnp.float32))      # (tq, Dh)
    ctx = jnp.concatenate(ctxs, axis=-1).astype(cd)                    # (tq, E)

    # fc_out + residual + LayerNorm1 epilogue (f32).
    o = jnp.dot(ctx, fcw_ref[...],
                preferred_element_type=jnp.float32) + fcb_ref[...]
    z = o + xq.astype(jnp.float32)
    mu = jnp.mean(z, axis=-1, keepdims=True)
    c = z - mu
    var = jnp.mean(c * c, axis=-1, keepdims=True)
    zn = c * jax.lax.rsqrt(var + eps)
    o_ref[0] = (zn * g_ref[...] + b_ref[...]).astype(o_ref.dtype)


def attention_block(x, mask_k, w_q, w_kv, fc_w, fc_b, g, b, *, heads, scale,
                    compute_dtype, cfg, eps=LN_EPS):
    # x: (N, L, E) compute dtype; mask_k: (N, 1, L) f32
    N, L, E = x.shape
    tq = _pick_tile(L, cfg["attn_tq"], 8)
    inv = _invariant_buffering()

    def wspec(arr):
        imap = lambda n, qi: (0,) * arr.ndim
        if inv is None:
            return pl.BlockSpec(arr.shape, imap)
        return pl.BlockSpec(arr.shape, imap, pipeline_mode=inv)

    kernel = functools.partial(_attn_block_kernel, heads=heads, scale=scale,
                               eps=eps, cd=compute_dtype)
    return pl.pallas_call(
        kernel,
        grid=(N, L // tq),
        in_specs=[
            pl.BlockSpec((1, tq, E), lambda n, qi: (n, qi, 0)),   # queries/residual
            pl.BlockSpec((1, L, E), lambda n, qi: (n, 0, 0)),     # keys/values
            pl.BlockSpec((1, 1, L), lambda n, qi: (n, 0, 0)),     # key-padding mask
            wspec(w_q), wspec(w_kv), wspec(fc_w),
            wspec(fc_b), wspec(g), wspec(b),
        ],
        out_specs=pl.BlockSpec((1, tq, E), lambda n, qi: (n, qi, 0)),
        out_shape=jax.ShapeDtypeStruct((N, L, E), compute_dtype),
        compiler_params=pltpu.CompilerParams(
            dimension_semantics=("parallel", "parallel"),
            vmem_limit_bytes=cfg["vmem_limit"]),
    )(x, x, mask_k, w_q, w_kv, fc_w, fc_b, g, b)


# --------------------------------------------------------------------------
# Kernel 3: fused feed-forward block (ff1 + ReLU + ff2 + residual + LN2)
#   grid = (M tiles ["parallel"], forward-expansion tiles ["arbitrary"])
# --------------------------------------------------------------------------

def _ffn_kernel(x_ref, w1_ref, b1_ref, w2_ref, b2_ref, g_ref, bb_ref,
                o_ref, acc_ref, *, eps, cd):
    f = pl.program_id(1)

    @pl.when(f == 0)
    def _():
        acc_ref[...] = jnp.zeros_like(acc_ref)

    h = jnp.dot(x_ref[...], w1_ref[...],
                preferred_element_type=jnp.float32) + b1_ref[...]
    h = jnp.maximum(h, 0.0)
    acc_ref[...] += jnp.dot(h.astype(cd), w2_ref[...],
                            preferred_element_type=jnp.float32)

    @pl.when(f == pl.num_programs(1) - 1)
    def _():
        z = acc_ref[...] + b2_ref[...] + x_ref[...].astype(jnp.float32)
        mu = jnp.mean(z, axis=-1, keepdims=True)
        c = z - mu
        var = jnp.mean(c * c, axis=-1, keepdims=True)
        zn = c * jax.lax.rsqrt(var + eps)
        o_ref[...] = (zn * g_ref[...] + bb_ref[...]).astype(o_ref.dtype)


def ffn_block(x, w1, b1, w2, b2, g, b, *, out_dtype, compute_dtype, cfg,
              eps=LN_EPS):
    # x: (M, E) compute dtype; w1: (E, FE); w2: (FE, E)
    M, E = x.shape
    FE = w1.shape[1]
    tm = _pick_tile(M, cfg["ffn_tm"], 8)
    tf = _pick_tile(FE, cfg["ffn_tf"], 128)
    inv = _invariant_buffering()

    def ispec(shape, imap):
        if inv is None:
            return pl.BlockSpec(shape, imap)
        return pl.BlockSpec(shape, imap, pipeline_mode=inv)

    kernel = functools.partial(_ffn_kernel, eps=eps, cd=compute_dtype)
    return pl.pallas_call(
        kernel,
        grid=(M // tm, FE // tf),
        in_specs=[
            pl.BlockSpec((tm, E), lambda i, f: (i, 0)),    # x (and residual)
            pl.BlockSpec((E, tf), lambda i, f: (0, f)),    # w1
            pl.BlockSpec((1, tf), lambda i, f: (0, f)),    # b1
            pl.BlockSpec((tf, E), lambda i, f: (f, 0)),    # w2
            ispec((1, E), lambda i, f: (0, 0)),            # b2  (grid-invariant)
            ispec((1, E), lambda i, f: (0, 0)),            # ln2 gain
            ispec((1, E), lambda i, f: (0, 0)),            # ln2 bias
        ],
        out_specs=pl.BlockSpec((tm, E), lambda i, f: (i, 0)),
        out_shape=jax.ShapeDtypeStruct((M, E), out_dtype),
        scratch_shapes=[pltpu.VMEM((tm, E), jnp.float32)],
        compiler_params=pltpu.CompilerParams(
            dimension_semantics=("parallel", "arbitrary"),
            vmem_limit_bytes=cfg["vmem_limit"]),
    )(x, w1, b1, w2, b2, g, b)


# --------------------------------------------------------------------------
# Parameters & model glue
# --------------------------------------------------------------------------

def init_params(key, *, input_size, embed_size, heads, forward_expansion,
                num_layers, compute_dtype=jnp.bfloat16):
    E = embed_size
    Dh = E // heads
    FE = forward_expansion * E
    scale = 1.0 / math.sqrt(E)

    def dense(k, fan_in, fan_out, bias=True):
        k1, k2 = jax.random.split(k)
        bound = 1.0 / math.sqrt(fan_in)
        w = jax.random.uniform(k1, (fan_in, fan_out), jnp.float32,
                               -bound, bound)
        if not bias:
            return w
        bvec = jax.random.uniform(k2, (1, fan_out), jnp.float32, -bound, bound)
        return w, bvec

    eye = jnp.eye(heads, dtype=jnp.float32)

    def block_diag(w):           # (Dh, Dh) -> (E, E); exact for the 0/1 eye
        return jnp.kron(eye, w)

    keys = jax.random.split(key, num_layers + 1)
    emb_w, emb_b = dense(keys[0], input_size, E)
    layers = []
    for i in range(num_layers):
        lk = jax.random.split(keys[i + 1], 6)
        wv = dense(lk[0], Dh, Dh, bias=False)
        wk = dense(lk[1], Dh, Dh, bias=False)
        wq = dense(lk[2], Dh, Dh, bias=False)
        fc_w, fc_b = dense(lk[3], E, E)
        ff1_w, ff1_b = dense(lk[4], E, FE)
        ff2_w, ff2_b = dense(lk[5], FE, E)
        # Fused block-diagonal QKV weights (exact vs. the per-head (Dh, Dh)
        # linears): one MXU matmul per projection, zeros are free while E fits
        # one MXU tile.  Softmax scale folded into w_q in f32, then cast.
        w_q = block_diag(wq * scale).astype(compute_dtype)             # (E,  E)
        w_kv = jnp.concatenate([block_diag(wk), block_diag(wv)],
                               axis=1).astype(compute_dtype)           # (E, 2E)
        layers.append(dict(
            wq=wq, wk=wk, wv=wv,                  # f32 masters (reference only)
            w_q=w_q, w_kv=w_kv,
            fc_w=fc_w.astype(compute_dtype), fc_b=fc_b,
            ff1_w=ff1_w.astype(compute_dtype), ff1_b=ff1_b,
            ff2_w=ff2_w.astype(compute_dtype), ff2_b=ff2_b,
            ln1_g=jnp.ones((1, E), jnp.float32),
            ln1_b=jnp.zeros((1, E), jnp.float32),
            ln2_g=jnp.ones((1, E), jnp.float32),
            ln2_b=jnp.zeros((1, E), jnp.float32),
        ))
    return dict(emb_w=emb_w.astype(compute_dtype), emb_b=emb_b, layers=layers)


def transformer_lin_encoder(params, x, mask, *, embed_size, heads,
                            compute_dtype=jnp.bfloat16):
    # embed=True path: out = dropout(lin_embedding(x)); dropout == identity.
    N, L, D = x.shape
    E = embed_size
    M = N * L
    scale = 1.0 / math.sqrt(E)
    cfg = _tpu_config()

    # bf16 inter-kernel activations: halves HBM traffic at every layer boundary.
    out = linear_bias(x.reshape(M, D).astype(compute_dtype),
                      params['emb_w'], params['emb_b'],
                      out_dtype=compute_dtype, cfg=cfg).reshape(N, L, E)

    # Key-padding mask (N,1,1,L) -> (N,1,L); broadcast inside the attention
    # kernel (no (N,L,L) mask in HBM).
    mask_k = mask.reshape(N, 1, L).astype(jnp.float32)

    n_layers = len(params['layers'])
    for li, p in enumerate(params['layers']):
        x1 = attention_block(out, mask_k, p['w_q'], p['w_kv'], p['fc_w'],
                             p['fc_b'], p['ln1_g'], p['ln1_b'],
                             heads=heads, scale=scale,
                             compute_dtype=compute_dtype, cfg=cfg)
        last = (li == n_layers - 1)
        out = ffn_block(x1.reshape(M, E), p['ff1_w'], p['ff1_b'],
                        p['ff2_w'], p['ff2_b'], p['ln2_g'], p['ln2_b'],
                        out_dtype=jnp.float32 if last else compute_dtype,
                        compute_dtype=compute_dtype, cfg=cfg).reshape(N, L, E)
    return out


# --------------------------------------------------------------------------
# Pure-JAX reference (mirrors bf16-on-MXU / f32-accumulate / bf16 handoffs)
# --------------------------------------------------------------------------

def reference(params, x, mask, *, embed_size, heads,
              compute_dtype=jnp.bfloat16):
    cd = compute_dtype
    N, L, _ = x.shape
    E = embed_size
    Dh = E // heads
    scale = 1.0 / math.sqrt(E)

    def mm(a, w):
        return jnp.dot(a.astype(cd), w.astype(cd),
                       preferred_element_type=jnp.float32)

    def ln(z, g, b, eps=LN_EPS):
        mu = jnp.mean(z, -1, keepdims=True)
        var = jnp.mean((z - mu) ** 2, -1, keepdims=True)
        return (z - mu) * jax.lax.rsqrt(var + eps) * g + b

    out = ((mm(x.reshape(N * L, -1), params['emb_w']) + params['emb_b'])
           .reshape(N, L, E).astype(cd))
    for li, p in enumerate(params['layers']):
        xin = out
        xh = xin.reshape(N, L, heads, Dh)
        q = jnp.einsum('nlhd,de->nlhe', xh.astype(cd), p['wq'].astype(cd),
                       preferred_element_type=jnp.float32)
        k = jnp.einsum('nlhd,de->nlhe', xh.astype(cd), p['wk'].astype(cd),
                       preferred_element_type=jnp.float32)
        v = jnp.einsum('nlhd,de->nlhe', xh.astype(cd), p['wv'].astype(cd),
                       preferred_element_type=jnp.float32)
        energy = jnp.einsum('nqhd,nkhd->nhqk', q.astype(cd), k.astype(cd),
                            preferred_element_type=jnp.float32)
        energy = jnp.where(mask == 0, jnp.float32(-1e20), energy)
        att = jax.nn.softmax(energy * scale, axis=3)
        ctx = jnp.einsum('nhqk,nkhd->nqhd', att.astype(cd), v.astype(cd),
                         preferred_element_type=jnp.float32).reshape(N * L, E)
        o = (mm(ctx, p['fc_w']) + p['fc_b']).reshape(N, L, E)
        x1 = ln(o + xin.astype(jnp.float32), p['ln1_g'], p['ln1_b']).astype(cd)
        h = jax.nn.relu(mm(x1.reshape(N * L, E), p['ff1_w']) + p['ff1_b'])
        ff = (mm(h, p['ff2_w']) + p['ff2_b']).reshape(N, L, E)
        out = ln(ff + x1.astype(jnp.float32), p['ln2_g'], p['ln2_b'])
        if li < len(params['layers']) - 1:
            out = out.astype(cd)
    return out


# --------------------------------------------------------------------------
# main
# --------------------------------------------------------------------------

if __name__ == "__main__":
    N, L = 2, 8
    input_size, embed_size, heads = 16, 32, 4
    forward_expansion, num_layers = 2, 2
    compute_dtype = jnp.bfloat16      # MXU in bf16, f32 accumulation

    # Warm the feature probe / hardware config outside the jit trace.
    _invariant_buffering()
    _tpu_config()

    key = jax.random.PRNGKey(0)
    kx, kp = jax.random.split(key)
    x = jax.random.normal(kx, (N, L, input_size), jnp.float32)
    # key-padding style mask (N, 1, 1, L): mask out last 2 keys of batch 1
    mask = jnp.ones((N, 1, 1, L), jnp.float32).at[1, 0, 0, L - 2:].set(0.0)

    params = init_params(kp, input_size=input_size, embed_size=embed_size,
                         heads=heads, forward_expansion=forward_expansion,
                         num_layers=num_layers, compute_dtype=compute_dtype)

    fwd = jax.jit(functools.partial(transformer_lin_encoder,
                                    embed_size=embed_size, heads=heads,
                                    compute_dtype=compute_dtype))
    out = fwd(params, x, mask)
    jax.block_until_ready(out)

    ref = reference(params, x, mask, embed_size=embed_size, heads=heads,
                    compute_dtype=compute_dtype)
    assert out.shape == (N, L, embed_size)
    err = jnp.max(jnp.abs(out - ref))
    assert jnp.allclose(out, ref, rtol=2e-2, atol=2e-2), \
        f"mismatch: max abs err {err}"

    print("KERNEL_OK")
</pallas_src>

<mosaic_0001>
module attributes {stable_mosaic.version = 11 : i64} {
  func.func @_linear_bias_kernel_single_k(%arg0: i32, %arg1: i32, %arg2: memref<16x16xbf16, #tpu.memory_space<vmem>>, %arg3: memref<16x32xbf16, #tpu.memory_space<vmem>>, %arg4: memref<1x32xf32, #tpu.memory_space<vmem>>, %arg5: memref<16x32xbf16, #tpu.memory_space<vmem>>) attributes {dimension_semantics = [#tpu.dimension_semantics<parallel>, #tpu.dimension_semantics<parallel>], iteration_bounds = array<i64: 1, 1>, scalar_prefetch = 0 : i64, scratch_operands = 0 : i64, tpu.core_type = #tpu.core_type<tc>, window_params = [{transform_indices = @transform_0, window_bounds = array<i64: 16, 16>}, {transform_indices = @transform_1, window_bounds = array<i64: 16, 32>}, {transform_indices = @transform_2, window_bounds = array<i64: 1, 32>}, {transform_indices = @transform_3, window_bounds = array<i64: 16, 32>}]} {
    %c0 = arith.constant 0 : index
    %c0_0 = arith.constant 0 : index
    %0 = vector.load %arg2[%c0, %c0_0] : memref<16x16xbf16, #tpu.memory_space<vmem>>, vector<16x16xbf16>
    %c0_1 = arith.constant 0 : index
    %c0_2 = arith.constant 0 : index
    %1 = vector.load %arg3[%c0_1, %c0_2] : memref<16x32xbf16, #tpu.memory_space<vmem>>, vector<16x32xbf16>
    %cst = arith.constant dense<0.000000e+00> : vector<16x32xf32>
    %2 = tpu.matmul %0, %1, %cst {dimension_numbers = #tpu.dot_dimension_numbers<[1], [0], [0], [1], [0, 0, 1, 1], [], []>} : vector<16x16xbf16>, vector<16x32xbf16>, vector<16x32xf32> -> vector<16x32xf32>
    %c0_3 = arith.constant 0 : index
    %c0_4 = arith.constant 0 : index
    %3 = vector.load %arg4[%c0_3, %c0_4] : memref<1x32xf32, #tpu.memory_space<vmem>>, vector<1x32xf32>
    %4 = vector.broadcast %3 : vector<1x32xf32> to vector<16x32xf32>
    %5 = arith.addf %2, %4 : vector<16x32xf32>
    %6 = arith.truncf %5 : vector<16x32xf32> to vector<16x32xbf16>
    %c0_5 = arith.constant 0 : index
    %c0_6 = arith.constant 0 : index
    %7 = vector.load %arg5[%c0_5, %c0_6] : memref<16x32xbf16, #tpu.memory_space<vmem>>, vector<16x32xbf16>
    tpu.vector_store %arg5[%c0_5, %c0_6], %6 {strides = array<i32>} : memref<16x32xbf16, #tpu.memory_space<vmem>>, vector<16x32xbf16>,
    return
  }
  func.func @transform_0(%arg0: i32, %arg1: i32) -> (i32, i32) {
    %c0_i32 = arith.constant 0 : i32
    %c0_i32_0 = arith.constant 0 : i32
    return %arg0, %c0_i32 : i32, i32
  }
  func.func @transform_1(%arg0: i32, %arg1: i32) -> (i32, i32) {
    %c0_i32 = arith.constant 0 : i32
    %c0_i32_0 = arith.constant 0 : i32
    return %c0_i32, %arg1 : i32, i32
  }
  func.func @transform_2(%arg0: i32, %arg1: i32) -> (i32, i32) {
    %c0_i32 = arith.constant 0 : i32
    %c0_i32_0 = arith.constant 0 : i32
    return %c0_i32, %arg1 : i32, i32
  }
  func.func @transform_3(%arg0: i32, %arg1: i32) -> (i32, i32) {
    %c0_i32 = arith.constant 0 : i32
    return %arg0, %arg1 : i32, i32
  }
}

module attributes {stable_mosaic.version = 11 : i64} {
  func.func @_attn_block_kernel(%arg0: i32, %arg1: i32, %arg2: memref<1x8x32xbf16, #tpu.memory_space<vmem>>, %arg3: memref<1x8x32xbf16, #tpu.memory_space<vmem>>, %arg4: memref<1x1x8xf32, #tpu.memory_space<vmem>>, %arg5: memref<32x32xbf16, #tpu.memory_space<vmem>>, %arg6: memref<32x64xbf16, #tpu.memory_space<vmem>>, %arg7: memref<32x32xbf16, #tpu.memory_space<vmem>>, %arg8: memref<1x32xf32, #tpu.memory_space<vmem>>, %arg9: memref<1x32xf32, #tpu.memory_space<vmem>>, %arg10: memref<1x32xf32, #tpu.memory_space<vmem>>, %arg11: memref<1x8x32xbf16, #tpu.memory_space<vmem>>) attributes {dimension_semantics = [#tpu.dimension_semantics<parallel>, #tpu.dimension_semantics<parallel>], iteration_bounds = array<i64: 2, 1>, scalar_prefetch = 0 : i64, scratch_operands = 0 : i64, tpu.core_type = #tpu.core_type<tc>, window_params = [{transform_indices = @transform_0, window_bounds = array<i64: 1, 8, 32>}, {transform_indices = @transform_1, window_bounds = array<i64: 1, 8, 32>}, {transform_indices = @transform_2, window_bounds = array<i64: 1, 1, 8>}, {pipeline_mode = #tpu.pipeline_mode<synchronous>, transform_indices = @transform_3, window_bounds = array<i64: 32, 32>}, {pipeline_mode = #tpu.pipeline_mode<synchronous>, transform_indices = @transform_4, window_bounds = array<i64: 32, 64>}, {pipeline_mode = #tpu.pipeline_mode<synchronous>, transform_indices = @transform_5, window_bounds = array<i64: 32, 32>}, {pipeline_mode = #tpu.pipeline_mode<synchronous>, transform_indices = @transform_6, window_bounds = array<i64: 1, 32>}, {pipeline_mode = #tpu.pipeline_mode<synchronous>, transform_indices = @transform_7, window_bounds = array<i64: 1, 32>}, {pipeline_mode = #tpu.pipeline_mode<synchronous>, transform_indices = @transform_8, window_bounds = array<i64: 1, 32>}, {transform_indices = @transform_9, window_bounds = array<i64: 1, 8, 32>}]} {
    %c0 = arith.constant 0 : index
    %c0_0 = arith.constant 0 : index
    %c0_1 = arith.constant 0 : index
    %0 = vector.load %arg2[%c0, %c0_0, %c0_1] : memref<1x8x32xbf16, #tpu.memory_space<vmem>>, vector<1x8x32xbf16>
    %1 = vector.shape_cast %0 : vector<1x8x32xbf16> to vector<8x32xbf16>
    %c0_2 = arith.constant 0 : index
    %c0_3 = arith.constant 0 : index
    %c0_4 = arith.constant 0 : index
    %2 = vector.load %arg3[%c0_2, %c0_3, %c0_4] : memref<1x8x32xbf16, #tpu.memory_space<vmem>>, vector<1x8x32xbf16>
    %3 = vector.shape_cast %2 : vector<1x8x32xbf16> to vector<8x32xbf16>
    %c0_5 = arith.constant 0 : index
    %c0_6 = arith.constant 0 : index
    %c0_7 = arith.constant 0 : index
    %4 = vector.load %arg4[%c0_5, %c0_6, %c0_7] : memref<1x1x8xf32, #tpu.memory_space<vmem>>, vector<1x1x8xf32>
    %5 = vector.shape_cast %4 : vector<1x1x8xf32> to vector<1x8xf32>
    %cst = arith.constant 0.000000e+00 : f32
    %6 = vector.broadcast %cst : f32 to vector<1x8xf32>
    %7 = arith.cmpf oeq, %5, %6 : vector<1x8xf32>
    %c0_8 = arith.constant 0 : index
    %c0_9 = arith.constant 0 : index
    %8 = vector.load %arg5[%c0_8, %c0_9] : memref<32x32xbf16, #tpu.memory_space<vmem>>, vector<32x32xbf16>
    %cst_10 = arith.constant dense<0.000000e+00> : vector<8x32xf32>
    %9 = tpu.matmul %1, %8, %cst_10 {dimension_numbers = #tpu.dot_dimension_numbers<[1], [0], [0], [1], [0, 0, 1, 1], [], []>} : vector<8x32xbf16>, vector<32x32xbf16>, vector<8x32xf32> -> vector<8x32xf32>
    %10 = arith.truncf %9 : vector<8x32xf32> to vector<8x32xbf16>
    %c0_11 = arith.constant 0 : index
    %c0_12 = arith.constant 0 : index
    %11 = vector.load %arg6[%c0_11, %c0_12] : memref<32x64xbf16, #tpu.memory_space<vmem>>, vector<32x64xbf16>
    %cst_13 = arith.constant dense<0.000000e+00> : vector<8x64xf32>
    %12 = tpu.matmul %3, %11, %cst_13 {dimension_numbers = #tpu.dot_dimension_numbers<[1], [0], [0], [1], [0, 0, 1, 1], [], []>} : vector<8x32xbf16>, vector<32x64xbf16>, vector<8x64xf32> -> vector<8x64xf32>
    %13 = arith.truncf %12 : vector<8x64xf32> to vector<8x64xbf16>
    %14 = vector.extract_strided_slice %10 {offsets = [0, 0], sizes = [8, 8], strides = [1, 1]} : vector<8x32xbf16> to vector<8x8xbf16>
    %15 = vector.extract_strided_slice %13 {offsets = [0, 0], sizes = [8, 8], strides = [1, 1]} : vector<8x64xbf16> to vector<8x8xbf16>
    %16 = vector.extract_strided_slice %13 {offsets = [0, 32], sizes = [8, 8], strides = [1, 1]} : vector<8x64xbf16> to vector<8x8xbf16>
    %cst_14 = arith.constant dense<0.000000e+00> : vector<8x8xf32>
    %17 = tpu.matmul %14, %15, %cst_14 {dimension_numbers = #tpu.dot_dimension_numbers<[1], [1], [0], [0], [0, 0, 1, 0], [], []>} : vector<8x8xbf16>, vector<8x8xbf16>, vector<8x8xf32> -> vector<8x8xf32>
    %cst_15 = arith.constant -1.76776698E+19 : f32
    %18 = vector.shape_cast %7 : vector<1x8xi1> to vector<1x8xi1>
    %19 = vector.broadcast %18 : vector<1x8xi1> to vector<8x8xi1>
    %20 = vector.broadcast %cst_15 : f32 to vector<8x8xf32>
    %21 = arith.select %19, %20, %17 : vector<8x8xi1>, vector<8x8xf32>
    %cst_16 = arith.constant dense<0xFF800000> : vector<8xf32>
    %22 = vector.multi_reduction <maximumf>, %21, %cst_16 [1] : vector<8x8xf32> to vector<8xf32>
    %23 = vector.shape_cast %22 : vector<8xf32> to vector<8x1xf32>
    %24 = vector.broadcast %23 : vector<8x1xf32> to vector<8x8xf32>
    %25 = arith.subf %21, %24 : vector<8x8xf32>
    %26 = math.exp %25 : vector<8x8xf32>
    %cst_17 = arith.constant dense<0.000000e+00> : vector<8xf32>
    %27 = vector.multi_reduction <add>, %26, %cst_17 [1] : vector<8x8xf32> to vector<8xf32>
    %28 = vector.shape_cast %27 : vector<8xf32> to vector<8x1xf32>
    %29 = tpu.reciprocal %28 {approx = true} : vector<8x1xf32> -> vector<8x1xf32>
    %30 = vector.broadcast %29 : vector<8x1xf32> to vector<8x8xf32>
    %31 = arith.mulf %26, %30 : vector<8x8xf32>
    %32 = arith.truncf %31 : vector<8x8xf32> to vector<8x8xbf16>
    %cst_18 = arith.constant dense<0.000000e+00> : vector<8x8xf32>
    %33 = tpu.matmul %32, %16, %cst_18 {dimension_numbers = #tpu.dot_dimension_numbers<[1], [0], [0], [1], [0, 0, 1, 1], [], []>} : vector<8x8xbf16>, vector<8x8xbf16>, vector<8x8xf32> -> vector<8x8xf32>
    %34 = vector.extract_strided_slice %10 {offsets = [0, 8], sizes = [8, 8], strides = [1, 1]} : vector<8x32xbf16> to vector<8x8xbf16>
    %35 = vector.extract_strided_slice %13 {offsets = [0, 8], sizes = [8, 8], strides = [1, 1]} : vector<8x64xbf16> to vector<8x8xbf16>
    %36 = vector.extract_strided_slice %13 {offsets = [0, 40], sizes = [8, 8], strides = [1, 1]} : vector<8x64xbf16> to vector<8x8xbf16>
    %cst_19 = arith.constant dense<0.000000e+00> : vector<8x8xf32>
    %37 = tpu.matmul %34, %35, %cst_19 {dimension_numbers = #tpu.dot_dimension_numbers<[1], [1], [0], [0], [0, 0, 1, 0], [], []>} : vector<8x8xbf16>, vector<8x8xbf16>, vector<8x8xf32> -> vector<8x8xf32>
    %cst_20 = arith.constant -1.76776698E+19 : f32
    %38 = vector.shape_cast %7 : vector<1x8xi1> to vector<1x8xi1>
    %39 = vector.broadcast %38 : vector<1x8xi1> to vector<8x8xi1>
    %40 = vector.broadcast %cst_20 : f32 to vector<8x8xf32>
    %41 = arith.select %39, %40, %37 : vector<8x8xi1>, vector<8x8xf32>
    %cst_21 = arith.constant dense<0xFF800000> : vector<8xf32>
    %42 = vector.multi_reduction <maximumf>, %41, %cst_21 [1] : vector<8x8xf32> to vector<8xf32>
    %43 = vector.shape_cast %42 : vector<8xf32> to vector<8x1xf32>
    %44 = vector.broadcast %43 : vector<8x1xf32> to vector<8x8xf32>
    %45 = arith.subf %41, %44 : vector<8x8xf32>
    %46 = math.exp %45 : vector<8x8xf32>
    %cst_22 = arith.constant dense<0.000000e+00> : vector<8xf32>
    %47 = vector.multi_reduction <add>, %46, %cst_22 [1] : vector<8x8xf32> to vector<8xf32>
    %48 = vector.shape_cast %47 : vector<8xf32> to vector<8x1xf32>
    %49 = tpu.reciprocal %48 {approx = true} : vector<8x1xf32> -> vector<8x1xf32>
    %50 = vector.broadcast %49 : vector<8x1xf32> to vector<8x8xf32>
    %51 = arith.mulf %46, %50 : vector<8x8xf32>
    %52 = arith.truncf %51 : vector<8x8xf32> to vector<8x8xbf16>
    %cst_23 = arith.constant dense<0.000000e+00> : vector<8x8xf32>
    %53 = tpu.matmul %52, %36, %cst_23 {dimension_numbers = #tpu.dot_dimension_numbers<[1], [0], [0], [1], [0, 0, 1, 1], [], []>} : vector<8x8xbf16>, vector<8x8xbf16>, vector<8x8xf32> -> vector<8x8xf32>
    %54 = vector.extract_strided_slice %10 {offsets = [0, 16], sizes = [8, 8], strides = [1, 1]} : vector<8x32xbf16> to vector<8x8xbf16>
    %55 = vector.extract_strided_slice %13 {offsets = [0, 16], sizes = [8, 8], strides = [1, 1]} : vector<8x64xbf16> to vector<8x8xbf16>
    %56 = vector.extract_strided_slice %13 {offsets = [0, 48], sizes = [8, 8], strides = [1, 1]} : vector<8x64xbf16> to vector<8x8xbf16>
    %cst_24 = arith.constant dense<0.000000e+00> : vector<8x8xf32>
    %57 = tpu.matmul %54, %55, %cst_24 {dimension_numbers = #tpu.dot_dimension_numbers<[1], [1], [0], [0], [0, 0, 1, 0], [], []>} : vector<8x8xbf16>, vector<8x8xbf16>, vector<8x8xf32> -> vector<8x8xf32>
    %cst_25 = arith.constant -1.76776698E+19 : f32
    %58 = vector.shape_cast %7 : vector<1x8xi1> to vector<1x8xi1>
    %59 = vector.broadcast %58 : vector<1x8xi1> to vector<8x8xi1>
    %60 = vector.broadcast %cst_25 : f32 to vector<8x8xf32>
    %61 = arith.select %59, %60, %57 : vector<8x8xi1>, vector<8x8xf32>
    %cst_26 = arith.constant dense<0xFF800000> : vector<8xf32>
    %62 = vector.multi_reduction <maximumf>, %61, %cst_26 [1] : vector<8x8xf32> to vector<8xf32>
    %63 = vector.shape_cast %62 : vector<8xf32> to vector<8x1xf32>
    %64 = vector.broadcast %63 : vector<8x1xf32> to vector<8x8xf32>
    %65 = arith.subf %61, %64 : vector<8x8xf32>
    %66 = math.exp %65 : vector<8x8xf32>
    %cst_27 = arith.constant dense<0.000000e+00> : vector<8xf32>
    %67 = vector.multi_reduction <add>, %66, %cst_27 [1] : vector<8x8xf32> to vector<8xf32>
    %68 = vector.shape_cast %67 : vector<8xf32> to vector<8x1xf32>
    %69 = tpu.reciprocal %68 {approx = true} : vector<8x1xf32> -> vector<8x1xf32>
    %70 = vector.broadcast %69 : vector<8x1xf32> to vector<8x8xf32>
    %71 = arith.mulf %66, %70 : vector<8x8xf32>
    %72 = arith.truncf %71 : vector<8x8xf32> to vector<8x8xbf16>
    %cst_28 = arith.constant dense<0.000000e+00> : vector<8x8xf32>
    %73 = tpu.matmul %72, %56, %cst_28 {dimension_numbers = #tpu.dot_dimension_numbers<[1], [0], [0], [1], [0, 0, 1, 1], [], []>} : vector<8x8xbf16>, vector<8x8xbf16>, vector<8x8xf32> -> vector<8x8xf32>
    %74 = vector.extract_strided_slice %10 {offsets = [0, 24], sizes = [8, 8], strides = [1, 1]} : vector<8x32xbf16> to vector<8x8xbf16>
    %75 = vector.extract_strided_slice %13 {offsets = [0, 24], sizes = [8, 8], strides = [1, 1]} : vector<8x64xbf16> to vector<8x8xbf16>
    %76 = vector.extract_strided_slice %13 {offsets = [0, 56], sizes = [8, 8], strides = [1, 1]} : vector<8x64xbf16> to vector<8x8xbf16>
    %cst_29 = arith.constant dense<0.000000e+00> : vector<8x8xf32>
    %77 = tpu.matmul %74, %75, %cst_29 {dimension_numbers = #tpu.dot_dimension_numbers<[1], [1], [0], [0], [0, 0, 1, 0], [], []>} : vector<8x8xbf16>, vector<8x8xbf16>, vector<8x8xf32> -> vector<8x8xf32>
    %cst_30 = arith.constant -1.76776698E+19 : f32
    %78 = vector.shape_cast %7 : vector<1x8xi1> to vector<1x8xi1>
    %79 = vector.broadcast %78 : vector<1x8xi1> to vector<8x8xi1>
    %80 = vector.broadcast %cst_30 : f32 to vector<8x8xf32>
    %81 = arith.select %79, %80, %77 : vector<8x8xi1>, vector<8x8xf32>
    %cst_31 = arith.constant dense<0xFF800000> : vector<8xf32>
    %82 = vector.multi_reduction <maximumf>, %81, %cst_31 [1] : vector<8x8xf32> to vector<8xf32>
    %83 = vector.shape_cast %82 : vector<8xf32> to vector<8x1xf32>
    %84 = vector.broadcast %83 : vector<8x1xf32> to vector<8x8xf32>
    %85 = arith.subf %81, %84 : vector<8x8xf32>
    %86 = math.exp %85 : vector<8x8xf32>
    %cst_32 = arith.constant dense<0.000000e+00> : vector<8xf32>
    %87 = vector.multi_reduction <add>, %86, %cst_32 [1] : vector<8x8xf32> to vector<8xf32>
    %88 = vector.shape_cast %87 : vector<8xf32> to vector<8x1xf32>
    %89 = tpu.reciprocal %88 {approx = true} : vector<8x1xf32> -> vector<8x1xf32>
    %90 = vector.broadcast %89 : vector<8x1xf32> to vector<8x8xf32>
    %91 = arith.mulf %86, %90 : vector<8x8xf32>
    %92 = arith.truncf %91 : vector<8x8xf32> to vector<8x8xbf16>
    %cst_33 = arith.constant dense<0.000000e+00> : vector<8x8xf32>
    %93 = tpu.matmul %92, %76, %cst_33 {dimension_numbers = #tpu.dot_dimension_numbers<[1], [0], [0], [1], [0, 0, 1, 1], [], []>} : vector<8x8xbf16>, vector<8x8xbf16>, vector<8x8xf32> -> vector<8x8xf32>
    %94 = tpu.concatenate %33, %53, %73, %93 in 1 : vector<8x8xf32>, vector<8x8xf32>, vector<8x8xf32>, vector<8x8xf32> -> vector<8x32xf32>
    %95 = arith.truncf %94 : vector<8x32xf32> to vector<8x32xbf16>
    %c0_34 = arith.constant 0 : index
    %c0_35 = arith.constant 0 : index
    %96 = vector.load %arg7[%c0_34, %c0_35] : memref<32x32xbf16, #tpu.memory_space<vmem>>, vector<32x32xbf16>
    %cst_36 = arith.constant dense<0.000000e+00> : vector<8x32xf32>
    %97 = tpu.matmul %95, %96, %cst_36 {dimension_numbers = #tpu.dot_dimension_numbers<[1], [0], [0], [1], [0, 0, 1, 1], [], []>} : vector<8x32xbf16>, vector<32x32xbf16>, vector<8x32xf32> -> vector<8x32xf32>
    %c0_37 = arith.constant 0 : index
    %c0_38 = arith.constant 0 : index
    %98 = vector.load %arg8[%c0_37, %c0_38] : memref<1x32xf32, #tpu.memory_space<vmem>>, vector<1x32xf32>
    %99 = vector.broadcast %98 : vector<1x32xf32> to vector<8x32xf32>
    %100 = arith.addf %97, %99 : vector<8x32xf32>
    %101 = arith.extf %1 : vector<8x32xbf16> to vector<8x32xf32>
    %102 = arith.addf %100, %101 : vector<8x32xf32>
    %cst_39 = arith.constant dense<0.000000e+00> : vector<8xf32>
    %103 = vector.multi_reduction <add>, %102, %cst_39 [1] : vector<8x32xf32> to vector<8xf32>
    %104 = vector.shape_cast %103 : vector<8xf32> to vector<8x1xf32>
    %cst_40 = arith.constant 3.200000e+01 : f32
    %105 = vector.broadcast %cst_40 : f32 to vector<8x1xf32>
    %106 = arith.divf %104, %105 : vector<8x1xf32>
    %107 = vector.broadcast %106 : vector<8x1xf32> to vector<8x32xf32>
    %108 = arith.subf %102, %107 : vector<8x32xf32>
    %109 = arith.mulf %108, %108 : vector<8x32xf32>
    %cst_41 = arith.constant dense<0.000000e+00> : vector<8xf32>
    %110 = vector.multi_reduction <add>, %109, %cst_41 [1] : vector<8x32xf32> to vector<8xf32>
    %111 = vector.shape_cast %110 : vector<8xf32> to vector<8x1xf32>
    %cst_42 = arith.constant 3.200000e+01 : f32
    %112 = vector.broadcast %cst_42 : f32 to vector<8x1xf32>
    %113 = arith.divf %111, %112 : vector<8x1xf32>
    %cst_43 = arith.constant 9.99999974E-6 : f32
    %114 = vector.broadcast %cst_43 : f32 to vector<8x1xf32>
    %115 = arith.addf %113, %114 : vector<8x1xf32>
    %116 = math.rsqrt %115 : vector<8x1xf32>
    %117 = vector.broadcast %116 : vector<8x1xf32> to vector<8x32xf32>
    %118 = arith.mulf %108, %117 : vector<8x32xf32>
    %c0_44 = arith.constant 0 : index
    %c0_45 = arith.constant 0 : index
    %119 = vector.load %arg9[%c0_44, %c0_45] : memref<1x32xf32, #tpu.memory_space<vmem>>, vector<1x32xf32>
    %120 = vector.broadcast %119 : vector<1x32xf32> to vector<8x32xf32>
    %121 = arith.mulf %118, %120 : vector<8x32xf32>
    %c0_46 = arith.constant 0 : index
    %c0_47 = arith.constant 0 : index
    %122 = vector.load %arg10[%c0_46, %c0_47] : memref<1x32xf32, #tpu.memory_space<vmem>>, vector<1x32xf32>
    %123 = vector.broadcast %122 : vector<1x32xf32> to vector<8x32xf32>
    %124 = arith.addf %121, %123 : vector<8x32xf32>
    %125 = arith.truncf %124 : vector<8x32xf32> to vector<8x32xbf16>
    %c0_48 = arith.constant 0 : index
    %c0_49 = arith.constant 0 : index
    %c0_50 = arith.constant 0 : index
    %126 = vector.load %arg11[%c0_48, %c0_49, %c0_50] : memref<1x8x32xbf16, #tpu.memory_space<vmem>>, vector<1x8x32xbf16>
    %127 = vector.shape_cast %126 : vector<1x8x32xbf16> to vector<8x32xbf16>
    %128 = vector.shape_cast %125 : vector<8x32xbf16> to vector<1x8x32xbf16>
    tpu.vector_store %arg11[%c0_48, %c0_49, %c0_50], %128 {strides = array<i32>} : memref<1x8x32xbf16, #tpu.memory_space<vmem>>, vector<1x8x32xbf16>,
    return
  }
  func.func @transform_0(%arg0: i32, %arg1: i32) -> (i32, i32, i32) {
    %c0_i32 = arith.constant 0 : i32
    %c0_i32_0 = arith.constant 0 : i32
    return %arg0, %arg1, %c0_i32 : i32, i32, i32
  }
  func.func @transform_1(%arg0: i32, %arg1: i32) -> (i32, i32, i32) {
    %c0_i32 = arith.constant 0 : i32
    %c0_i32_0 = arith.constant 0 : i32
    %c0_i32_1 = arith.constant 0 : i32
    return %arg0, %c0_i32, %c0_i32_0 : i32, i32, i32
  }
  func.func @transform_2(%arg0: i32, %arg1: i32) -> (i32, i32, i32) {
    %c0_i32 = arith.constant 0 : i32
    %c0_i32_0 = arith.constant 0 : i32
    %c0_i32_1 = arith.constant 0 : i32
    return %arg0, %c0_i32, %c0_i32_0 : i32, i32, i32
  }
  func.func @transform_3(%arg0: i32, %arg1: i32) -> (i32, i32) {
    %c0_i32 = arith.constant 0 : i32
    %c0_i32_0 = arith.constant 0 : i32
    %c0_i32_1 = arith.constant 0 : i32
    return %c0_i32, %c0_i32_0 : i32, i32
  }
  func.func @transform_4(%arg0: i32, %arg1: i32) -> (i32, i32) {
    %c0_i32 = arith.constant 0 : i32
    %c0_i32_0 = arith.constant 0 : i32
    %c0_i32_1 = arith.constant 0 : i32
    return %c0_i32, %c0_i32_0 : i32, i32
  }
  func.func @transform_5(%arg0: i32, %arg1: i32) -> (i32, i32) {
    %c0_i32 = arith.constant 0 : i32
    %c0_i32_0 = arith.constant 0 : i32
    %c0_i32_1 = arith.constant 0 : i32
    return %c0_i32, %c0_i32_0 : i32, i32
  }
  func.func @transform_6(%arg0: i32, %arg1: i32) -> (i32, i32) {
    %c0_i32 = arith.constant 0 : i32
    %c0_i32_0 = arith.constant 0 : i32
    %c0_i32_1 = arith.constant 0 : i32
    return %c0_i32, %c0_i32_0 : i32, i32
  }
  func.func @transform_7(%arg0: i32, %arg1: i32) -> (i32, i32) {
    %c0_i32 = arith.constant 0 : i32
    %c0_i32_0 = arith.constant 0 : i32
    %c0_i32_1 = arith.constant 0 : i32
    return %c0_i32, %c0_i32_0 : i32, i32
  }
  func.func @transform_8(%arg0: i32, %arg1: i32) -> (i32, i32) {
    %c0_i32 = arith.constant 0 : i32
    %c0_i32_0 = arith.constant 0 : i32
    %c0_i32_1 = arith.constant 0 : i32
    return %c0_i32, %c0_i32_0 : i32, i32
  }
  func.func @transform_9(%arg0: i32, %arg1: i32) -> (i32, i32, i32) {
    %c0_i32 = arith.constant 0 : i32
    %c0_i32_0 = arith.constant 0 : i32
    return %arg0, %arg1, %c0_i32 : i32, i32, i32
  }
}

module attributes {stable_mosaic.version = 11 : i64} {
  func.func @_ffn_kernel(%arg0: i32, %arg1: i32, %arg2: memref<16x32xbf16, #tpu.memory_space<vmem>>, %arg3: memref<32x64xbf16, #tpu.memory_space<vmem>>, %arg4: memref<1x64xf32, #tpu.memory_space<vmem>>, %arg5: memref<64x32xbf16, #tpu.memory_space<vmem>>, %arg6: memref<1x32xf32, #tpu.memory_space<vmem>>, %arg7: memref<1x32xf32, #tpu.memory_space<vmem>>, %arg8: memref<1x32xf32, #tpu.memory_space<vmem>>, %arg9: memref<16x32xbf16, #tpu.memory_space<vmem>>, %arg10: memref<16x32xf32, #tpu.memory_space<vmem>>) attributes {dimension_semantics = [#tpu.dimension_semantics<parallel>, #tpu.dimension_semantics<arbitrary>], iteration_bounds = array<i64: 1, 1>, scalar_prefetch = 0 : i64, scratch_operands = 1 : i64, tpu.core_type = #tpu.core_type<tc>, window_params = [{transform_indices = @transform_0, window_bounds = array<i64: 16, 32>}, {transform_indices = @transform_1, window_bounds = array<i64: 32, 64>}, {transform_indices = @transform_2, window_bounds = array<i64: 1, 64>}, {transform_indices = @transform_3, window_bounds = array<i64: 64, 32>}, {pipeline_mode = #tpu.pipeline_mode<synchronous>, transform_indices = @transform_4, window_bounds = array<i64: 1, 32>}, {pipeline_mode = #tpu.pipeline_mode<synchronous>, transform_indices = @transform_5, window_bounds = array<i64: 1, 32>}, {pipeline_mode = #tpu.pipeline_mode<synchronous>, transform_indices = @transform_6, window_bounds = array<i64: 1, 32>}, {transform_indices = @transform_7, window_bounds = array<i64: 16, 32>}]} {
    %c0_i32 = arith.constant 0 : i32
    %0 = arith.cmpi eq, %arg1, %c0_i32 : i32
    %1 = arith.extui %0 : i1 to i32
    %c0_i32_0 = arith.constant 0 : i32
    %2 = arith.cmpi ne, %1, %c0_i32_0 : i32
    scf.if %2 {
      %cst_16 = arith.constant 0.000000e+00 : f32
      %20 = vector.broadcast %cst_16 : f32 to vector<16x32xf32>
      %c0_17 = arith.constant 0 : index
      %c0_18 = arith.constant 0 : index
      %21 = vector.load %arg10[%c0_17, %c0_18] : memref<16x32xf32, #tpu.memory_space<vmem>>, vector<16x32xf32>
      tpu.vector_store %arg10[%c0_17, %c0_18], %20 {strides = array<i32>} : memref<16x32xf32, #tpu.memory_space<vmem>>, vector<16x32xf32>,
    } else {
    }
    %c0 = arith.constant 0 : index
    %c0_1 = arith.constant 0 : index
    %3 = vector.load %arg2[%c0, %c0_1] : memref<16x32xbf16, #tpu.memory_space<vmem>>, vector<16x32xbf16>
    %c0_2 = arith.constant 0 : index
    %c0_3 = arith.constant 0 : index
    %4 = vector.load %arg3[%c0_2, %c0_3] : memref<32x64xbf16, #tpu.memory_space<vmem>>, vector<32x64xbf16>
    %cst = arith.constant dense<0.000000e+00> : vector<16x64xf32>
    %5 = tpu.matmul %3, %4, %cst {dimension_numbers = #tpu.dot_dimension_numbers<[1], [0], [0], [1], [0, 0, 1, 1], [], []>} : vector<16x32xbf16>, vector<32x64xbf16>, vector<16x64xf32> -> vector<16x64xf32>
    %c0_4 = arith.constant 0 : index
    %c0_5 = arith.constant 0 : index
    %6 = vector.load %arg4[%c0_4, %c0_5] : memref<1x64xf32, #tpu.memory_space<vmem>>, vector<1x64xf32>
    %7 = vector.broadcast %6 : vector<1x64xf32> to vector<16x64xf32>
    %8 = arith.addf %5, %7 : vector<16x64xf32>
    %cst_6 = arith.constant 0.000000e+00 : f32
    %9 = vector.broadcast %cst_6 : f32 to vector<16x64xf32>
    %10 = arith.maximumf %8, %9 : vector<16x64xf32>
    %c0_7 = arith.constant 0 : index
    %c0_8 = arith.constant 0 : index
    %11 = vector.load %arg10[%c0_7, %c0_8] : memref<16x32xf32, #tpu.memory_space<vmem>>, vector<16x32xf32>
    %12 = arith.truncf %10 : vector<16x64xf32> to vector<16x64xbf16>
    %c0_9 = arith.constant 0 : index
    %c0_10 = arith.constant 0 : index
    %13 = vector.load %arg5[%c0_9, %c0_10] : memref<64x32xbf16, #tpu.memory_space<vmem>>, vector<64x32xbf16>
    %cst_11 = arith.constant dense<0.000000e+00> : vector<16x32xf32>
    %14 = tpu.matmul %12, %13, %cst_11 {dimension_numbers = #tpu.dot_dimension_numbers<[1], [0], [0], [1], [0, 0, 1, 1], [], []>} : vector<16x64xbf16>, vector<64x32xbf16>, vector<16x32xf32> -> vector<16x32xf32>
    %15 = arith.addf %11, %14 : vector<16x32xf32>
    %c0_12 = arith.constant 0 : index
    %c0_13 = arith.constant 0 : index
    %16 = vector.load %arg10[%c0_12, %c0_13] : memref<16x32xf32, #tpu.memory_space<vmem>>, vector<16x32xf32>
    tpu.vector_store %arg10[%c0_12, %c0_13], %15 {strides = array<i32>} : memref<16x32xf32, #tpu.memory_space<vmem>>, vector<16x32xf32>,
    %c0_i32_14 = arith.constant 0 : i32
    %17 = arith.cmpi eq, %arg1, %c0_i32_14 : i32
    %18 = arith.extui %17 : i1 to i32
    %c0_i32_15 = arith.constant 0 : i32
    %19 = arith.cmpi ne, %18, %c0_i32_15 : i32
    scf.if %19 {
      %c0_16 = arith.constant 0 : index
      %c0_17 = arith.constant 0 : index
      %20 = vector.load %arg10[%c0_16, %c0_17] : memref<16x32xf32, #tpu.memory_space<vmem>>, vector<16x32xf32>
      %c0_18 = arith.constant 0 : index
      %c0_19 = arith.constant 0 : index
      %21 = vector.load %arg6[%c0_18, %c0_19] : memref<1x32xf32, #tpu.memory_space<vmem>>, vector<1x32xf32>
      %22 = vector.broadcast %21 : vector<1x32xf32> to vector<16x32xf32>
      %23 = arith.addf %20, %22 : vector<16x32xf32>
      %c0_20 = arith.constant 0 : index
      %c0_21 = arith.constant 0 : index
      %24 = vector.load %arg2[%c0_20, %c0_21] : memref<16x32xbf16, #tpu.memory_space<vmem>>, vector<16x32xbf16>
      %25 = arith.extf %24 : vector<16x32xbf16> to vector<16x32xf32>
      %26 = arith.addf %23, %25 : vector<16x32xf32>
      %cst_22 = arith.constant dense<0.000000e+00> : vector<16xf32>
      %27 = vector.multi_reduction <add>, %26, %cst_22 [1] : vector<16x32xf32> to vector<16xf32>
      %28 = vector.shape_cast %27 : vector<16xf32> to vector<16x1xf32>
      %cst_23 = arith.constant 3.200000e+01 : f32
      %29 = vector.broadcast %cst_23 : f32 to vector<16x1xf32>
      %30 = arith.divf %28, %29 : vector<16x1xf32>
      %31 = vector.broadcast %30 : vector<16x1xf32> to vector<16x32xf32>
      %32 = arith.subf %26, %31 : vector<16x32xf32>
      %33 = arith.mulf %32, %32 : vector<16x32xf32>
      %cst_24 = arith.constant dense<0.000000e+00> : vector<16xf32>
      %34 = vector.multi_reduction <add>, %33, %cst_24 [1] : vector<16x32xf32> to vector<16xf32>
      %35 = vector.shape_cast %34 : vector<16xf32> to vector<16x1xf32>
      %cst_25 = arith.constant 3.200000e+01 : f32
      %36 = vector.broadcast %cst_25 : f32 to vector<16x1xf32>
      %37 = arith.divf %35, %36 : vector<16x1xf32>
      %cst_26 = arith.constant 9.99999974E-6 : f32
      %38 = vector.broadcast %cst_26 : f32 to vector<16x1xf32>
      %39 = arith.addf %37, %38 : vector<16x1xf32>
      %40 = math.rsqrt %39 : vector<16x1xf32>
      %41 = vector.broadcast %40 : vector<16x1xf32> to vector<16x32xf32>
      %42 = arith.mulf %32, %41 : vector<16x32xf32>
      %c0_27 = arith.constant 0 : index
      %c0_28 = arith.constant 0 : index
      %43 = vector.load %arg7[%c0_27, %c0_28] : memref<1x32xf32, #tpu.memory_space<vmem>>, vector<1x32xf32>
      %44 = vector.broadcast %43 : vector<1x32xf32> to vector<16x32xf32>
      %45 = arith.mulf %42, %44 : vector<16x32xf32>
      %c0_29 = arith.constant 0 : index
      %c0_30 = arith.constant 0 : index
      %46 = vector.load %arg8[%c0_29, %c0_30] : memref<1x32xf32, #tpu.memory_space<vmem>>, vector<1x32xf32>
      %47 = vector.broadcast %46 : vector<1x32xf32> to vector<16x32xf32>
      %48 = arith.addf %45, %47 : vector<16x32xf32>
      %49 = arith.truncf %48 : vector<16x32xf32> to vector<16x32xbf16>
      %c0_31 = arith.constant 0 : index
      %c0_32 = arith.constant 0 : index
      %50 = vector.load %arg9[%c0_31, %c0_32] : memref<16x32xbf16, #tpu.memory_space<vmem>>, vector<16x32xbf16>
      tpu.vector_store %arg9[%c0_31, %c0_32], %49 {strides = array<i32>} : memref<16x32xbf16, #tpu.memory_space<vmem>>, vector<16x32xbf16>,
    } else {
    }
    return
  }
  func.func @transform_0(%arg0: i32, %arg1: i32) -> (i32, i32) {
    %c0_i32 = arith.constant 0 : i32
    %c0_i32_0 = arith.constant 0 : i32
    return %arg0, %c0_i32 : i32, i32
  }
  func.func @transform_1(%arg0: i32, %arg1: i32) -> (i32, i32) {
    %c0_i32 = arith.constant 0 : i32
    %c0_i32_0 = arith.constant 0 : i32
    return %c0_i32, %arg1 : i32, i32
  }
  func.func @transform_2(%arg0: i32, %arg1: i32) -> (i32, i32) {
    %c0_i32 = arith.constant 0 : i32
    %c0_i32_0 = arith.constant 0 : i32
    return %c0_i32, %arg1 : i32, i32
  }
  func.func @transform_3(%arg0: i32, %arg1: i32) -> (i32, i32) {
    %c0_i32 = arith.constant 0 : i32
    %c0_i32_0 = arith.constant 0 : i32
    return %arg1, %c0_i32 : i32, i32
  }
  func.func @transform_4(%arg0: i32, %arg1: i32) -> (i32, i32) {
    %c0_i32 = arith.constant 0 : i32
    %c0_i32_0 = arith.constant 0 : i32
    %c0_i32_1 = arith.constant 0 : i32
    return %c0_i32, %c0_i32_0 : i32, i32
  }
  func.func @transform_5(%arg0: i32, %arg1: i32) -> (i32, i32) {
    %c0_i32 = arith.constant 0 : i32
    %c0_i32_0 = arith.constant 0 : i32
    %c0_i32_1 = arith.constant 0 : i32
    return %c0_i32, %c0_i32_0 : i32, i32
  }
  func.func @transform_6(%arg0: i32, %arg1: i32) -> (i32, i32) {
    %c0_i32 = arith.constant 0 : i32
    %c0_i32_0 = arith.constant 0 : i32
    %c0_i32_1 = arith.constant 0 : i32
    return %c0_i32, %c0_i32_0 : i32, i32
  }
  func.func @transform_7(%arg0: i32, %arg1: i32) -> (i32, i32) {
    %c0_i32 = arith.constant 0 : i32
    %c0_i32_0 = arith.constant 0 : i32
    return %arg0, %c0_i32 : i32, i32
  }
}

module attributes {stable_mosaic.version = 11 : i64} {
  func.func @_ffn_kernel(%arg0: i32, %arg1: i32, %arg2: memref<16x32xbf16, #tpu.memory_space<vmem>>, %arg3: memref<32x64xbf16, #tpu.memory_space<vmem>>, %arg4: memref<1x64xf32, #tpu.memory_space<vmem>>, %arg5: memref<64x32xbf16, #tpu.memory_space<vmem>>, %arg6: memref<1x32xf32, #tpu.memory_space<vmem>>, %arg7: memref<1x32xf32, #tpu.memory_space<vmem>>, %arg8: memref<1x32xf32, #tpu.memory_space<vmem>>, %arg9: memref<16x32xf32, #tpu.memory_space<vmem>>, %arg10: memref<16x32xf32, #tpu.memory_space<vmem>>) attributes {dimension_semantics = [#tpu.dimension_semantics<parallel>, #tpu.dimension_semantics<arbitrary>], iteration_bounds = array<i64: 1, 1>, scalar_prefetch = 0 : i64, scratch_operands = 1 : i64, tpu.core_type = #tpu.core_type<tc>, window_params = [{transform_indices = @transform_0, window_bounds = array<i64: 16, 32>}, {transform_indices = @transform_1, window_bounds = array<i64: 32, 64>}, {transform_indices = @transform_2, window_bounds = array<i64: 1, 64>}, {transform_indices = @transform_3, window_bounds = array<i64: 64, 32>}, {pipeline_mode = #tpu.pipeline_mode<synchronous>, transform_indices = @transform_4, window_bounds = array<i64: 1, 32>}, {pipeline_mode = #tpu.pipeline_mode<synchronous>, transform_indices = @transform_5, window_bounds = array<i64: 1, 32>}, {pipeline_mode = #tpu.pipeline_mode<synchronous>, transform_indices = @transform_6, window_bounds = array<i64: 1, 32>}, {transform_indices = @transform_7, window_bounds = array<i64: 16, 32>}]} {
    %c0_i32 = arith.constant 0 : i32
    %0 = arith.cmpi eq, %arg1, %c0_i32 : i32
    %1 = arith.extui %0 : i1 to i32
    %c0_i32_0 = arith.constant 0 : i32
    %2 = arith.cmpi ne, %1, %c0_i32_0 : i32
    scf.if %2 {
      %cst_16 = arith.constant 0.000000e+00 : f32
      %20 = vector.broadcast %cst_16 : f32 to vector<16x32xf32>
      %c0_17 = arith.constant 0 : index
      %c0_18 = arith.constant 0 : index
      %21 = vector.load %arg10[%c0_17, %c0_18] : memref<16x32xf32, #tpu.memory_space<vmem>>, vector<16x32xf32>
      tpu.vector_store %arg10[%c0_17, %c0_18], %20 {strides = array<i32>} : memref<16x32xf32, #tpu.memory_space<vmem>>, vector<16x32xf32>,
    } else {
    }
    %c0 = arith.constant 0 : index
    %c0_1 = arith.constant 0 : index
    %3 = vector.load %arg2[%c0, %c0_1] : memref<16x32xbf16, #tpu.memory_space<vmem>>, vector<16x32xbf16>
    %c0_2 = arith.constant 0 : index
    %c0_3 = arith.constant 0 : index
    %4 = vector.load %arg3[%c0_2, %c0_3] : memref<32x64xbf16, #tpu.memory_space<vmem>>, vector<32x64xbf16>
    %cst = arith.constant dense<0.000000e+00> : vector<16x64xf32>
    %5 = tpu.matmul %3, %4, %cst {dimension_numbers = #tpu.dot_dimension_numbers<[1], [0], [0], [1], [0, 0, 1, 1], [], []>} : vector<16x32xbf16>, vector<32x64xbf16>, vector<16x64xf32> -> vector<16x64xf32>
    %c0_4 = arith.constant 0 : index
    %c0_5 = arith.constant 0 : index
    %6 = vector.load %arg4[%c0_4, %c0_5] : memref<1x64xf32, #tpu.memory_space<vmem>>, vector<1x64xf32>
    %7 = vector.broadcast %6 : vector<1x64xf32> to vector<16x64xf32>
    %8 = arith.addf %5, %7 : vector<16x64xf32>
    %cst_6 = arith.constant 0.000000e+00 : f32
    %9 = vector.broadcast %cst_6 : f32 to vector<16x64xf32>
    %10 = arith.maximumf %8, %9 : vector<16x64xf32>
    %c0_7 = arith.constant 0 : index
    %c0_8 = arith.constant 0 : index
    %11 = vector.load %arg10[%c0_7, %c0_8] : memref<16x32xf32, #tpu.memory_space<vmem>>, vector<16x32xf32>
    %12 = arith.truncf %10 : vector<16x64xf32> to vector<16x64xbf16>
    %c0_9 = arith.constant 0 : index
    %c0_10 = arith.constant 0 : index
    %13 = vector.load %arg5[%c0_9, %c0_10] : memref<64x32xbf16, #tpu.memory_space<vmem>>, vector<64x32xbf16>
    %cst_11 = arith.constant dense<0.000000e+00> : vector<16x32xf32>
    %14 = tpu.matmul %12, %13, %cst_11 {dimension_numbers = #tpu.dot_dimension_numbers<[1], [0], [0], [1], [0, 0, 1, 1], [], []>} : vector<16x64xbf16>, vector<64x32xbf16>, vector<16x32xf32> -> vector<16x32xf32>
    %15 = arith.addf %11, %14 : vector<16x32xf32>
    %c0_12 = arith.constant 0 : index
    %c0_13 = arith.constant 0 : index
    %16 = vector.load %arg10[%c0_12, %c0_13] : memref<16x32xf32, #tpu.memory_space<vmem>>, vector<16x32xf32>
    tpu.vector_store %arg10[%c0_12, %c0_13], %15 {strides = array<i32>} : memref<16x32xf32, #tpu.memory_space<vmem>>, vector<16x32xf32>,
    %c0_i32_14 = arith.constant 0 : i32
    %17 = arith.cmpi eq, %arg1, %c0_i32_14 : i32
    %18 = arith.extui %17 : i1 to i32
    %c0_i32_15 = arith.constant 0 : i32
    %19 = arith.cmpi ne, %18, %c0_i32_15 : i32
    scf.if %19 {
      %c0_16 = arith.constant 0 : index
      %c0_17 = arith.constant 0 : index
      %20 = vector.load %arg10[%c0_16, %c0_17] : memref<16x32xf32, #tpu.memory_space<vmem>>, vector<16x32xf32>
      %c0_18 = arith.constant 0 : index
      %c0_19 = arith.constant 0 : index
      %21 = vector.load %arg6[%c0_18, %c0_19] : memref<1x32xf32, #tpu.memory_space<vmem>>, vector<1x32xf32>
      %22 = vector.broadcast %21 : vector<1x32xf32> to vector<16x32xf32>
      %23 = arith.addf %20, %22 : vector<16x32xf32>
      %c0_20 = arith.constant 0 : index
      %c0_21 = arith.constant 0 : index
      %24 = vector.load %arg2[%c0_20, %c0_21] : memref<16x32xbf16, #tpu.memory_space<vmem>>, vector<16x32xbf16>
      %25 = arith.extf %24 : vector<16x32xbf16> to vector<16x32xf32>
      %26 = arith.addf %23, %25 : vector<16x32xf32>
      %cst_22 = arith.constant dense<0.000000e+00> : vector<16xf32>
      %27 = vector.multi_reduction <add>, %26, %cst_22 [1] : vector<16x32xf32> to vector<16xf32>
      %28 = vector.shape_cast %27 : vector<16xf32> to vector<16x1xf32>
      %cst_23 = arith.constant 3.200000e+01 : f32
      %29 = vector.broadcast %cst_23 : f32 to vector<16x1xf32>
      %30 = arith.divf %28, %29 : vector<16x1xf32>
      %31 = vector.broadcast %30 : vector<16x1xf32> to vector<16x32xf32>
      %32 = arith.subf %26, %31 : vector<16x32xf32>
      %33 = arith.mulf %32, %32 : vector<16x32xf32>
      %cst_24 = arith.constant dense<0.000000e+00> : vector<16xf32>
      %34 = vector.multi_reduction <add>, %33, %cst_24 [1] : vector<16x32xf32> to vector<16xf32>
      %35 = vector.shape_cast %34 : vector<16xf32> to vector<16x1xf32>
      %cst_25 = arith.constant 3.200000e+01 : f32
      %36 = vector.broadcast %cst_25 : f32 to vector<16x1xf32>
      %37 = arith.divf %35, %36 : vector<16x1xf32>
      %cst_26 = arith.constant 9.99999974E-6 : f32
      %38 = vector.broadcast %cst_26 : f32 to vector<16x1xf32>
      %39 = arith.addf %37, %38 : vector<16x1xf32>
      %40 = math.rsqrt %39 : vector<16x1xf32>
      %41 = vector.broadcast %40 : vector<16x1xf32> to vector<16x32xf32>
      %42 = arith.mulf %32, %41 : vector<16x32xf32>
      %c0_27 = arith.constant 0 : index
      %c0_28 = arith.constant 0 : index
      %43 = vector.load %arg7[%c0_27, %c0_28] : memref<1x32xf32, #tpu.memory_space<vmem>>, vector<1x32xf32>
      %44 = vector.broadcast %43 : vector<1x32xf32> to vector<16x32xf32>
      %45 = arith.mulf %42, %44 : vector<16x32xf32>
      %c0_29 = arith.constant 0 : index
      %c0_30 = arith.constant 0 : index
      %46 = vector.load %arg8[%c0_29, %c0_30] : memref<1x32xf32, #tpu.memory_space<vmem>>, vector<1x32xf32>
      %47 = vector.broadcast %46 : vector<1x32xf32> to vector<16x32xf32>
      %48 = arith.addf %45, %47 : vector<16x32xf32>
      %c0_31 = arith.constant 0 : index
      %c0_32 = arith.constant 0 : index
      %49 = vector.load %arg9[%c0_31, %c0_32] : memref<16x32xf32, #tpu.memory_space<vmem>>, vector<16x32xf32>
      tpu.vector_store %arg9[%c0_31, %c0_32], %48 {strides = array<i32>} : memref<16x32xf32, #tpu.memory_space<vmem>>, vector<16x32xf32>,
    } else {
    }
    return
  }
  func.func @transform_0(%arg0: i32, %arg1: i32) -> (i32, i32) {
    %c0_i32 = arith.constant 0 : i32
    %c0_i32_0 = arith.constant 0 : i32
    return %arg0, %c0_i32 : i32, i32
  }
  func.func @transform_1(%arg0: i32, %arg1: i32) -> (i32, i32) {
    %c0_i32 = arith.constant 0 : i32
    %c0_i32_0 = arith.constant 0 : i32
    return %c0_i32, %arg1 : i32, i32
  }
  func.func @transform_2(%arg0: i32, %arg1: i32) -> (i32, i32) {
    %c0_i32 = arith.constant 0 : i32
    %c0_i32_0 = arith.constant 0 : i32
    return %c0_i32, %arg1 : i32, i32
  }
  func.func @transform_3(%arg0: i32, %arg1: i32) -> (i32, i32) {
    %c0_i32 = arith.constant 0 : i32
    %c0_i32_0 = arith.constant 0 : i32
    return %arg1, %c0_i32 : i32, i32
  }
  func.func @transform_4(%arg0: i32, %arg1: i32) -> (i32, i32) {
    %c0_i32 = arith.constant 0 : i32
    %c0_i32_0 = arith.constant 0 : i32
    %c0_i32_1 = arith.constant 0 : i32
    return %c0_i32, %c0_i32_0 : i32, i32
  }
  func.func @transform_5(%arg0: i32, %arg1: i32) -> (i32, i32) {
    %c0_i32 = arith.constant 0 : i32
    %c0_i32_0 = arith.constant 0 : i32
    %c0_i32_1 = arith.constant 0 : i32
    return %c0_i32, %c0_i32_0 : i32, i32
  }
  func.func @transform_6(%arg0: i32, %arg1: i32) -> (i32, i32) {
    %c0_i32 = arith.constant 0 : i32
    %c0_i32_0 = arith.constant 0 : i32
    %c0_i32_1 = arith.constant 0 : i32
    return %c0_i32, %c0_i32_0 : i32, i32
  }
  func.func @transform_7(%arg0: i32, %arg1: i32) -> (i32, i32) {
    %c0_i32 = arith.constant 0 : i32
    %c0_i32_0 = arith.constant 0 : i32
    return %arg0, %c0_i32 : i32, i32
  }
}

</mosaic_0001>

<llo_original>
// kernel: transformer_lin_encoder.5
$region0: #{transformer_lin_encoder.5}
  #allocation0 [shape = 'u32[]', space=smem, size = 0x4, offset = 0x4, fixed_abs, tag = 'smem constant byte address 0x4 - core index']
  #allocation1 [shape = 'u32[144,128]{1,0:T(1,128)}', space=vmem, size = 0x12000, scoped, tag = 'internal scratch']
  %s0 = inlined_call_operand.vmem [shape: bf16[16,16], index: 0, kind: input, shape index: {}]
  %s1 = inlined_call_operand.vmem [shape: bf16[16,32], index: 1, kind: input, shape index: {}]
  %s2 = inlined_call_operand.hbm [shape: f32[1,32], index: 2, kind: input, shape index: {}]
  %s3 = inlined_call_operand.vmem [shape: bf16[16,32], index: 3, kind: output, shape index: {}]
  %s4 = sld [smem:[#allocation0]]
  $region26: #{transformer_lin_encoder.5} parent=0
    _
  %s6 = ssub.s32 1, %s4
  %s7 = scalar_select 0, %s6, %s4
  $region1: #{transformer_lin_encoder.5} parent=0
    #allocation2 [shape = 'u8[512]{0}', space=vmem, size = 0x400, scoped, tag = 'input window, operand 2, single buffered']
    #allocation3 [shape = 's32[1]{0}', space=sflag, size = 0x4, scoped, tag = 'scoped memory for transformer_lin_encoder.5']
    %8 = vsyncpa [#allocation3], 0
    // Predicated region
    $region2: #{transformer_lin_encoder.5} parent=1 // pred_check
      _
    $region3: #{transformer_lin_encoder.5} parent=1 // pred_check_branch
      %10 = sbr.rel (0) target = $region5
    $region4: #{transformer_lin_encoder.5} parent=1 // pred_region
      _
    $region5: #{transformer_lin_encoder.5} parent=1 // pred_fallthru
      _
    // Predicated region
    $region6: #{transformer_lin_encoder.5} parent=1 // pred_check
      _
    $region7: #{transformer_lin_encoder.5} parent=1 // pred_check_branch
      %12 = sbr.rel (0) target = $region9
    $region8: #{transformer_lin_encoder.5} parent=1 // pred_region
      _
    $region9: #{transformer_lin_encoder.5} parent=1 // pred_fallthru
      _
    // Predicated region
    $region10: #{transformer_lin_encoder.5} parent=1 // pred_check
      _
    $region11: #{transformer_lin_encoder.5} parent=1 // pred_check_branch
      %14 = sbr.rel (0) target = $region13
    $region12: #{transformer_lin_encoder.5} parent=1 // pred_region
      %s16 = ssub.s32 16, 16
      %17 = vsyncadd [#allocation3], %s16
      %s19 = sshll.u32 [#allocation2], 4
      %s20 = int_to_ptr.vmem [resolvable:$true] %s19
      %22 = dma.hbm_to_vmem [thread:$0]  %s2, 16, %s20, [#allocation3]
    $region13: #{transformer_lin_encoder.5} parent=1 // pred_fallthru
      _
    // Predicated region
    $region14: #{transformer_lin_encoder.5} parent=1 // pred_check
      _
    $region15: #{transformer_lin_encoder.5} parent=1 // pred_check_branch
      %24 = sbr.rel (0) target = $region17
    $region16: #{transformer_lin_encoder.5} parent=1 // pred_region
      %25 = dma.done [#allocation3], 16
    $region17: #{transformer_lin_encoder.5} parent=1 // pred_fallthru
      _
    %v27 = vld [vmem:[%s0] sm:$0xf]
    %v28 = vld [vmem:[%s0 + $0x4] sm:$0xf]
    %v29 = vld [vmem:[%s1] sm:$0xf]
    %v30 = vld [vmem:[%s1 + $0x4] sm:$0xf]
    %v31 = vld [vmem:[#allocation2] sm:$0x1]
    %v33 = vlaneseq
    %v34 = vshrl.u32 %v33, 7
    %v35 = vsub.s32 0, %v34
    %v36 = vrot.slane %v31, %v35
    %v40 = vunpack.c.l.b16 %v27
    %v41 = vunpack.c.l.b16 %v28
    %v42 = vpack.c.b16 %v41, %v40
    %v45 = vunpack.c.l.b16 %v29
    %v46 = vunpack.c.l.b16 %v30
    %v47 = vpack.c.b16 %v46, %v45
    %vm49 = vcmask 130048
    %v51 = vsel %vm49, %v42, 0
    %53 = vmatprep.subr.bf16.mxu0 0
    %54 = vmatpush1.bf16.msra.mxu0 %v47
    %55 = vmatprep.subr.bf16.mxu0 0
    %56 = vmatpush1.bf16.msra.mxu0 0
    %57 = vmatprep.subr.bf16.mxu0 0
    %58 = vmatpush1.bf16.msra.mxu0 0
    %59 = vmatprep.subr.bf16.mxu0 0
    %60 = vmatpush1.bf16.msra.mxu0 0
    %61 = vmatprep.subr.bf16.mxu0 0
    %62 = vmatpush1.bf16.msra.mxu0 0
    %63 = vmatprep.subr.bf16.mxu0 0
    %64 = vmatpush1.bf16.msra.mxu0 0
    %65 = vmatprep.subr.bf16.mxu0 0
    %66 = vmatpush1.bf16.msra.mxu0 0
    %67 = vmatprep.subr.bf16.mxu0 0
    %68 = vmatpush1.bf16.msra.mxu0 0
    %69 = vmatprep.subr.bf16.mxu0 0
    %70 = vmatpush1.bf16.msra.mxu0 0
    %71 = vmatprep.subr.bf16.mxu0 0
    %72 = vmatpush1.bf16.msra.mxu0 0
    %73 = vmatprep.subr.bf16.mxu0 0
    %74 = vmatpush1.bf16.msra.mxu0 0
    %75 = vmatprep.subr.bf16.mxu0 0
    %76 = vmatpush1.bf16.msra.mxu0 0
    %77 = vmatprep.subr.bf16.mxu0 0
    %78 = vmatpush1.bf16.msra.mxu0 0
    %79 = vmatprep.subr.bf16.mxu0 0
    %80 = vmatpush1.bf16.msra.mxu0 0
    %81 = vmatprep.subr.bf16.mxu0 0
    %82 = vmatpush1.bf16.msra.mxu0 0
    %83 = vmatprep.subr.bf16.mxu0 0
    %84 = vmatpush1.bf16.msra.mxu0 0
    %85 = vmatprep.mubr.bf16.mxu0 0
    %86 = vmatmul.mubr.bf16.gmra.mrb[0].mxu0 %v51
    %v87 = vpop.f32.mrb[0].mxu0
    %v88 = vadd.f32 %v36, %v87
    %v89 = vpop.f32.mrb[0].mxu0
    %v90 = vpop.f32.mrb[0].mxu0
    %v91 = vadd.f32 %v36, %v90
    %v92 = vpop.f32.mrb[0].mxu0
    %93 = vdwg.mxu0
    %v94 = vpack.c.bf16 %v91, %v88
    %v96 = vunpack.c.l.b16 %v94
    %v97 = vunpack.c.h.b16 %v94
    %v98 = vpack.c.b16 %v96, %v96
    %v99 = vpack.c.b16 %v97, %v97
    %vm102 = vcmask 257024
    %103 = vst.msk [vmem:[%s3] sm:$0xf] %vm102, %v98
    %104 = vst.msk [vmem:[%s3 + $0x4] sm:$0xf] %vm102, %v99
    // Predicated region
    $region18: #{transformer_lin_encoder.5} parent=1 // pred_check
      _
    $region19: #{transformer_lin_encoder.5} parent=1 // pred_check_branch
      %106 = sbr.rel (0) target = $region21
    $region20: #{transformer_lin_encoder.5} parent=1 // pred_region
      _
    $region21: #{transformer_lin_encoder.5} parent=1 // pred_fallthru
      _
    // Predicated region
    $region22: #{transformer_lin_encoder.5} parent=1 // pred_check
      _
    $region23: #{transformer_lin_encoder.5} parent=1 // pred_check_branch
      %108 = sbr.rel (0) target = $region25
    $region24: #{transformer_lin_encoder.5} parent=1 // pred_region
      _
    $region25: #{transformer_lin_encoder.5} parent=1 // pred_fallthru
      _
    %109 = vsyncpa [#allocation3], 1

// kernel: transformer_lin_encoder.6
$region0: #{transformer_lin_encoder.6}
  #allocation0 [shape = 'u32[]', space=smem, size = 0x4, offset = 0x4, fixed_abs, tag = 'smem constant byte address 0x4 - core index']
  #allocation1 [shape = 'u32[144,128]{1,0:T(1,128)}', space=vmem, size = 0x12000, scoped, tag = 'internal scratch']
  %s0 = inlined_call_operand.vmem [shape: bf16[2,8,32], index: 0, kind: input, shape index: {}, may-alias: {0,1}]
  %s1 = inlined_call_operand.vmem [shape: bf16[2,8,32], index: 1, kind: input, shape index: {}, may-alias: {0,1}]
  %s2 = inlined_call_operand.vmem [shape: f32[2,1,8], index: 2, kind: input, shape index: {}]
  %s3 = inlined_call_operand.vmem [shape: bf16[32,32], index: 3, kind: input, shape index: {}]
  %s4 = inlined_call_operand.vmem [shape: bf16[32,64], index: 4, kind: input, shape index: {}]
  %s5 = inlined_call_operand.vmem [shape: bf16[32,32], index: 5, kind: input, shape index: {}]
  %s6 = inlined_call_operand.vmem [shape: f32[1,32], index: 6, kind: input, shape index: {}]
  %s7 = inlined_call_operand.vmem [shape: f32[1,32], index: 7, kind: input, shape index: {}]
  %s8 = inlined_call_operand.vmem [shape: f32[1,32], index: 8, kind: input, shape index: {}]
  %s9 = inlined_call_operand.vmem [shape: bf16[2,8,32], index: 9, kind: output, shape index: {}]
  %s10 = sld [smem:[#allocation0]]
  $region69: #{transformer_lin_encoder.6} parent=0
    _
  %s12 = ssub.s32 1, %s10
  %s13 = scalar_select 0, %s12, %s10
  loop: start=0, step=1, limit=4
  $region2: #{transformer_lin_encoder.6} parent=0 // loop_pre_header
    _
  $region3: #{transformer_lin_encoder.6} parent=0 // loop_header
    %s15 = sphi 0, %s19
    %p16 = scmp.ge.s32.totalorder %s15, 4
    %s22 = sphi 0, %s34
    %s23 = sphi 0, %s30
    %s24 = sphi 0, %s22
    %s25 = sphi 0, %s23
    %s26 = sphi 0, %s24
    %s27 = sphi 0, %s25
    %s39 = sphi 0, %s41
    %s42 = sphi 0, %s39
    %s43 = sphi 0, %s42
    %s59 = sphi 0, %s43
    %s65 = sphi 0, %s67
    %s68 = sphi 0, %s65
    %s69 = sphi 0, %s68
    %s85 = sphi 0, %s69
    %s91 = sphi 0, %s93
    %s94 = sphi 0, %s91
    %s95 = sphi 0, %s94
    %s111 = sphi 0, %s95
    %s115 = sphi 0, %s115
    %s117 = sphi 0, %s115
    %s118 = sphi 0, %s117
    %s132 = sphi 0, %s118
    %s136 = sphi 0, %s136
    %s138 = sphi 0, %s136
    %s139 = sphi 0, %s138
    %s153 = sphi 0, %s139
    %s157 = sphi 0, %s157
    %s159 = sphi 0, %s157
    %s160 = sphi 0, %s159
    %s174 = sphi 0, %s160
    %s178 = sphi 0, %s178
    %s180 = sphi 0, %s178
    %s181 = sphi 0, %s180
    %s195 = sphi 0, %s181
    %s199 = sphi 0, %s199
    %s201 = sphi 0, %s199
    %s202 = sphi 0, %s201
    %s216 = sphi 0, %s202
    %s220 = sphi 0, %s220
    %s222 = sphi 0, %s220
    %s223 = sphi 0, %s222
    %s237 = sphi 0, %s223
    %s245 = sphi 0, %s247
    %s248 = sphi 0, %s245
    %s249 = sphi 0, %s248
    %s265 = sphi 0, %s249
  $region4: #{transformer_lin_encoder.6} parent=0 // loop_header_branch
    %18 = sbr.rel (%p16) target = $region8
  $region5: #{transformer_lin_encoder.6} parent=0 // loop_body
    %s20 = ssub.s32 %s15, 1
    %s21 = ssub.s32 %s15, 2
    %s28 = sadd.s32 1, %s23
    %p29 = scmp.ge.s32.totalorder %s28, 1
    %s30 = scalar_select %p29, 0, %s28
    %s31 = sadd.s32 1, %s22
    %s32 = scalar_select %p29, %s31, %s22
    %p33 = scmp.ge.s32.totalorder %s32, 2
    %s34 = scalar_select %p33, 0, %s32
    %s35 = ssub.s32 %s22, %s34
    %s36 = ssub.s32 %s23, %s30
    %s37 = sor.u32 %s35, %s36
    %p38 = scmp.eq.s32.totalorder %s37, 0
    %s40 = sadd.s32 %s39, 1
    %s41 = scalar_select %p38, %s39, %s40
    %p44 = pneg %p38
    %p45 = scmp.eq.s32.totalorder %s15, 1
    %p46 = por %p44, %p45
    %p47 = scmp.ne.s32.totalorder %s39, %s42
    %p48 = scmp.eq.s32.totalorder %s15, 0
    %p49 = por %p47, %p48
    %p50 = scmp.ne.s32.totalorder %s39, %s42
    %p51 = scmp.eq.s32.totalorder %s20, 1
    %p52 = por %p50, %p51
    %p53 = scmp.ne.s32.totalorder %s42, %s43
    %p54 = scmp.eq.s32.totalorder %s20, 0
    %p55 = por %p53, %p54
    %p56 = scmp.ne.s32.totalorder %s42, %s43
    %p57 = scmp.eq.s32.totalorder %s21, 1
    %p58 = por %p56, %p57
    %p60 = scmp.ne.s32.totalorder %s43, %s59
    %p61 = scmp.eq.s32.totalorder %s21, 0
    %p62 = por %p60, %p61
    %s63 = ssub.s32 %s22, %s34
    %p64 = scmp.eq.s32.totalorder %s63, 0
    %s66 = sadd.s32 %s65, 1
    %s67 = scalar_select %p64, %s65, %s66
    %p70 = pneg %p64
    %p71 = scmp.eq.s32.totalorder %s15, 1
    %p72 = por %p70, %p71
    %p73 = scmp.ne.s32.totalorder %s65, %s68
    %p74 = scmp.eq.s32.totalorder %s15, 0
    %p75 = por %p73, %p74
    %p76 = scmp.ne.s32.totalorder %s65, %s68
    %p77 = scmp.eq.s32.totalorder %s20, 1
    %p78 = por %p76, %p77
    %p79 = scmp.ne.s32.totalorder %s68, %s69
    %p80 = scmp.eq.s32.totalorder %s20, 0
    %p81 = por %p79, %p80
    %p82 = scmp.ne.s32.totalorder %s68, %s69
    %p83 = scmp.eq.s32.totalorder %s21, 1
    %p84 = por %p82, %p83
    %p86 = scmp.ne.s32.totalorder %s69, %s85
    %p87 = scmp.eq.s32.totalorder %s21, 0
    %p88 = por %p86, %p87
    %s89 = ssub.s32 %s22, %s34
    %p90 = scmp.eq.s32.totalorder %s89, 0
    %s92 = sadd.s32 %s91, 1
    %s93 = scalar_select %p90, %s91, %s92
    %p96 = pneg %p90
    %p97 = scmp.eq.s32.totalorder %s15, 1
    %p98 = por %p96, %p97
    %p99 = scmp.ne.s32.totalorder %s91, %s94
    %p100 = scmp.eq.s32.totalorder %s15, 0
    %p101 = por %p99, %p100
    %p102 = scmp.ne.s32.totalorder %s91, %s94
    %p103 = scmp.eq.s32.totalorder %s20, 1
    %p104 = por %p102, %p103
    %p105 = scmp.ne.s32.totalorder %s94, %s95
    %p106 = scmp.eq.s32.totalorder %s20, 0
    %p107 = por %p105, %p106
    %p108 = scmp.ne.s32.totalorder %s94, %s95
    %p109 = scmp.eq.s32.totalorder %s21, 1
    %p110 = por %p108, %p109
    %p112 = scmp.ne.s32.totalorder %s95, %s111
    %p113 = scmp.eq.s32.totalorder %s21, 0
    %p114 = por %p112, %p113
    %s116 = sadd.s32 %s115, 1
    %p119 = scmp.eq.s32.totalorder %s15, 1
    %p120 = scmp.ne.s32.totalorder %s115, %s117
    %p121 = scmp.eq.s32.totalorder %s15, 0
    %p122 = por %p120, %p121
    %p123 = scmp.ne.s32.totalorder %s115, %s117
    %p124 = scmp.eq.s32.totalorder %s20, 1
    %p125 = por %p123, %p124
    %p126 = scmp.ne.s32.totalorder %s117, %s118
    %p127 = scmp.eq.s32.totalorder %s20, 0
    %p128 = por %p126, %p127
    %p129 = scmp.ne.s32.totalorder %s117, %s118
    %p130 = scmp.eq.s32.totalorder %s21, 1
    %p131 = por %p129, %p130
    %p133 = scmp.ne.s32.totalorder %s118, %s132
    %p134 = scmp.eq.s32.totalorder %s21, 0
    %p135 = por %p133, %p134
    %s137 = sadd.s32 %s136, 1
    %p140 = scmp.eq.s32.totalorder %s15, 1
    %p141 = scmp.ne.s32.totalorder %s136, %s138
    %p142 = scmp.eq.s32.totalorder %s15, 0
    %p143 = por %p141, %p142
    %p144 = scmp.ne.s32.totalorder %s136, %s138
    %p145 = scmp.eq.s32.totalorder %s20, 1
    %p146 = por %p144, %p145
    %p147 = scmp.ne.s32.totalorder %s138, %s139
    %p148 = scmp.eq.s32.totalorder %s20, 0
    %p149 = por %p147, %p148
    %p150 = scmp.ne.s32.totalorder %s138, %s139
    %p151 = scmp.eq.s32.totalorder %s21, 1
    %p152 = por %p150, %p151
    %p154 = scmp.ne.s32.totalorder %s139, %s153
    %p155 = scmp.eq.s32.totalorder %s21, 0
    %p156 = por %p154, %p155
    %s158 = sadd.s32 %s157, 1
    %p161 = scmp.eq.s32.totalorder %s15, 1
    %p162 = scmp.ne.s32.totalorder %s157, %s159
    %p163 = scmp.eq.s32.totalorder %s15, 0
    %p164 = por %p162, %p163
    %p165 = scmp.ne.s32.totalorder %s157, %s159
    %p166 = scmp.eq.s32.totalorder %s20, 1
    %p167 = por %p165, %p166
    %p168 = scmp.ne.s32.totalorder %s159, %s160
    %p169 = scmp.eq.s32.totalorder %s20, 0
    %p170 = por %p168, %p169
    %p171 = scmp.ne.s32.totalorder %s159, %s160
    %p172 = scmp.eq.s32.totalorder %s21, 1
    %p173 = por %p171, %p172
    %p175 = scmp.ne.s32.totalorder %s160, %s174
    %p176 = scmp.eq.s32.totalorder %s21, 0
    %p177 = por %p175, %p176
    %s179 = sadd.s32 %s178, 1
    %p182 = scmp.eq.s32.totalorder %s15, 1
    %p183 = scmp.ne.s32.totalorder %s178, %s180
    %p184 = scmp.eq.s32.totalorder %s15, 0
    %p185 = por %p183, %p184
    %p186 = scmp.ne.s32.totalorder %s178, %s180
    %p187 = scmp.eq.s32.totalorder %s20, 1
    %p188 = por %p186, %p187
    %p189 = scmp.ne.s32.totalorder %s180, %s181
    %p190 = scmp.eq.s32.totalorder %s20, 0
    %p191 = por %p189, %p190
    %p192 = scmp.ne.s32.totalorder %s180, %s181
    %p193 = scmp.eq.s32.totalorder %s21, 1
    %p194 = por %p192, %p193
    %p196 = scmp.ne.s32.totalorder %s181, %s195
    %p197 = scmp.eq.s32.totalorder %s21, 0
    %p198 = por %p196, %p197
    %s200 = sadd.s32 %s199, 1
    %p203 = scmp.eq.s32.totalorder %s15, 1
    %p204 = scmp.ne.s32.totalorder %s199, %s201
    %p205 = scmp.eq.s32.totalorder %s15, 0
    %p206 = por %p204, %p205
    %p207 = scmp.ne.s32.totalorder %s199, %s201
    %p208 = scmp.eq.s32.totalorder %s20, 1
    %p209 = por %p207, %p208
    %p210 = scmp.ne.s32.totalorder %s201, %s202
    %p211 = scmp.eq.s32.totalorder %s20, 0
    %p212 = por %p210, %p211
    %p213 = scmp.ne.s32.totalorder %s201, %s202
    %p214 = scmp.eq.s32.totalorder %s21, 1
    %p215 = por %p213, %p214
    %p217 = scmp.ne.s32.totalorder %s202, %s216
    %p218 = scmp.eq.s32.totalorder %s21, 0
    %p219 = por %p217, %p218
    %s221 = sadd.s32 %s220, 1
    %p224 = scmp.eq.s32.totalorder %s15, 1
    %p225 = scmp.ne.s32.totalorder %s220, %s222
    %p226 = scmp.eq.s32.totalorder %s15, 0
    %p227 = por %p225, %p226
    %p228 = scmp.ne.s32.totalorder %s220, %s222
    %p229 = scmp.eq.s32.totalorder %s20, 1
    %p230 = por %p228, %p229
    %p231 = scmp.ne.s32.totalorder %s222, %s223
    %p232 = scmp.eq.s32.totalorder %s20, 0
    %p233 = por %p231, %p232
    %p234 = scmp.ne.s32.totalorder %s222, %s223
    %p235 = scmp.eq.s32.totalorder %s21, 1
    %p236 = por %p234, %p235
    %p238 = scmp.ne.s32.totalorder %s223, %s237
    %p239 = scmp.eq.s32.totalorder %s21, 0
    %p240 = por %p238, %p239
    %s241 = ssub.s32 %s22, %s34
    %s242 = ssub.s32 %s23, %s30
    %s243 = sor.u32 %s241, %s242
    %p244 = scmp.eq.s32.totalorder %s243, 0
    %s246 = sadd.s32 %s245, 1
    %s247 = scalar_select %p244, %s245, %s246
    %p250 = pneg %p244
    %p251 = scmp.eq.s32.totalorder %s15, 1
    %p252 = por %p250, %p251
    %p253 = scmp.ne.s32.totalorder %s245, %s248
    %p254 = scmp.eq.s32.totalorder %s15, 0
    %p255 = por %p253, %p254
    %p256 = scmp.ne.s32.totalorder %s245, %s248
    %p257 = scmp.eq.s32.totalorder %s20, 1
    %p258 = por %p256, %p257
    %p259 = scmp.ne.s32.totalorder %s248, %s249
    %p260 = scmp.eq.s32.totalorder %s20, 0
    %p261 = por %p259, %p260
    %p262 = scmp.ne.s32.totalorder %s248, %s249
    %p263 = scmp.eq.s32.totalorder %s21, 1
    %p264 = por %p262, %p263
    %p266 = scmp.ne.s32.totalorder %s249, %s265
    %p267 = scmp.eq.s32.totalorder %s21, 0
    %p268 = por %p266, %p267
    %p269 = scmp.le.s32.totalorder 1, %s15
    %p270 = scmp.lt.s32.totalorder %s15, 3
    %p271 = pnand %p269, %p270
    %p272 = pneg %p271
    // Predicated region
    $region9: #{transformer_lin_encoder.6} parent=5 // pred_check
      _
    $region10: #{transformer_lin_encoder.6} parent=5 // pred_check_branch
      %274 = sbr.rel (%p271) target = $region12
    $region11: #{transformer_lin_encoder.6} parent=5 // pred_region
      %s275 = ssub.s32 %s15, 1
      // Predicated region
      $region13: #{transformer_lin_encoder.6} parent=11 // pred_check
        %p276 = pneg %p128
      $region14: #{transformer_lin_encoder.6} parent=11 // pred_check_branch
        %278 = sbr.rel (%p276) target = $region16
      $region15: #{transformer_lin_encoder.6} parent=11 // pred_region
        _
      $region16: #{transformer_lin_encoder.6} parent=11 // pred_fallthru
        _
      // Predicated region
      $region17: #{transformer_lin_encoder.6} parent=11 // pred_check
        %p279 = pneg %p149
      $region18: #{transformer_lin_encoder.6} parent=11 // pred_check_branch
        %281 = sbr.rel (%p279) target = $region20
      $region19: #{transformer_lin_encoder.6} parent=11 // pred_region
        _
      $region20: #{transformer_lin_encoder.6} parent=11 // pred_fallthru
        _
      // Predicated region
      $region21: #{transformer_lin_encoder.6} parent=11 // pred_check
        %p282 = pneg %p170
      $region22: #{transformer_lin_encoder.6} parent=11 // pred_check_branch
        %284 = sbr.rel (%p282) target = $region24
      $region23: #{transformer_lin_encoder.6} parent=11 // pred_region
        _
      $region24: #{transformer_lin_encoder.6} parent=11 // pred_fallthru
        _
      // Predicated region
      $region25: #{transformer_lin_encoder.6} parent=11 // pred_check
        %p285 = pneg %p191
      $region26: #{transformer_lin_encoder.6} parent=11 // pred_check_branch
        %287 = sbr.rel (%p285) target = $region28
      $region27: #{transformer_lin_encoder.6} parent=11 // pred_region
        _
      $region28: #{transformer_lin_encoder.6} parent=11 // pred_fallthru
        _
      // Predicated region
      $region29: #{transformer_lin_encoder.6} parent=11 // pred_check
        %p288 = pneg %p212
      $region30: #{transformer_lin_encoder.6} parent=11 // pred_check_branch
        %290 = sbr.rel (%p288) target = $region32
      $region31: #{transformer_lin_encoder.6} parent=11 // pred_region
        _
      $region32: #{transformer_lin_encoder.6} parent=11 // pred_fallthru
        _
      // Predicated region
      $region33: #{transformer_lin_encoder.6} parent=11 // pred_check
        %p291 = pneg %p233
      $region34: #{transformer_lin_encoder.6} parent=11 // pred_check_branch
        %293 = sbr.rel (%p291) target = $region36
      $region35: #{transformer_lin_encoder.6} parent=11 // pred_region
        _
      $region36: #{transformer_lin_encoder.6} parent=11 // pred_fallthru
        _
    $region12: #{transformer_lin_encoder.6} parent=5 // pred_fallthru
      _
    %p294 = scmp.lt.s32.totalorder %s15, 2
    // Predicated region
    $region37: #{transformer_lin_encoder.6} parent=5 // pred_check
      %p295 = pneg %p294
    $region38: #{transformer_lin_encoder.6} parent=5 // pred_check_branch
      %297 = sbr.rel (%p295) target = $region40
    $region39: #{transformer_lin_encoder.6} parent=5 // pred_region
      // Predicated region
      $region41: #{transformer_lin_encoder.6} parent=39 // pred_check
        %p298 = pneg %p49
      $region42: #{transformer_lin_encoder.6} parent=39 // pred_check_branch
        %300 = sbr.rel (%p298) target = $region44
      $region43: #{transformer_lin_encoder.6} parent=39 // pred_region
        %p301 = scmp.lt.s32.totalorder %s22, 1
        %s302 = scalar_select %p301, %s22, 1
        %p303 = scmp.lt.s32.totalorder %s23, 0
        %s304 = scalar_select %p303, %s23, 0
        %s305 = sadd.s32 %s304, %s302
        %s306 = smul.addr %s305, 4
        %s307 = scalar_lea.vmem %s0, %s306
      $region44: #{transformer_lin_encoder.6} parent=39 // pred_fallthru
        _
      // Predicated region
      $region45: #{transformer_lin_encoder.6} parent=39 // pred_check
        %p308 = pneg %p75
      $region46: #{transformer_lin_encoder.6} parent=39 // pred_check_branch
        %310 = sbr.rel (%p308) target = $region48
      $region47: #{transformer_lin_encoder.6} parent=39 // pred_region
        %p311 = scmp.lt.s32.totalorder %s22, 1
        %s312 = scalar_select %p311, %s22, 1
        %s313 = smul.addr %s312, 4
        %s314 = scalar_lea.vmem %s1, %s313
      $region48: #{transformer_lin_encoder.6} parent=39 // pred_fallthru
        _
      // Predicated region
      $region49: #{transformer_lin_encoder.6} parent=39 // pred_check
        %p315 = pneg %p101
      $region50: #{transformer_lin_encoder.6} parent=39 // pred_check_branch
        %317 = sbr.rel (%p315) target = $region52
      $region51: #{transformer_lin_encoder.6} parent=39 // pred_region
        %p318 = scmp.lt.s32.totalorder %s22, 1
        %s319 = scalar_select %p318, %s22, 1
        %s320 = scalar_lea.vmem %s2, %s319
      $region52: #{transformer_lin_encoder.6} parent=39 // pred_fallthru
        _
    $region40: #{transformer_lin_encoder.6} parent=5 // pred_fallthru
      _
    %p321 = scmp.le.s32.totalorder 1, %s15
    %p322 = scmp.lt.s32.totalorder %s15, 3
    %p323 = pnand %p321, %p322
    %p324 = pneg %p323
    // Predicated region
    $region53: #{transformer_lin_encoder.6} parent=5 // pred_check
      _
    $region54: #{transformer_lin_encoder.6} parent=5 // pred_check_branch
      %326 = sbr.rel (%p323) target = $region56
    $region55: #{transformer_lin_encoder.6} parent=5 // pred_region
      %s327 = ssub.s32 %s15, 1
      %p328 = scmp.lt.s32.totalorder %s24, 1
      %s329 = scalar_select %p328, %s24, 1
      %p330 = scmp.lt.s32.totalorder %s25, 0
      %s331 = scalar_select %p330, %s25, 0
      %s332 = sadd.s32 %s331, %s329
      %s333 = smul.addr %s332, 4
      %s334 = scalar_lea.vmem %s0, %s333
      %p335 = pneg %p55
      %p336 = pneg %p52
      %p337 = scmp.lt.s32.totalorder %s24, 1
      %s338 = scalar_select %p337, %s24, 1
      %s339 = smul.addr %s338, 4
      %s340 = scalar_lea.vmem %s1, %s339
      %p341 = pneg %p81
      %p342 = pneg %p78
      %p343 = scmp.lt.s32.totalorder %s24, 1
      %s344 = scalar_select %p343, %s24, 1
      %s345 = scalar_lea.vmem %s2, %s344
      %p346 = pneg %p107
      %p347 = pneg %p104
      %p348 = pneg %p128
      %p349 = pneg %p125
      %p350 = pneg %p149
      %p351 = pneg %p146
      %p352 = pneg %p170
      %p353 = pneg %p167
      %p354 = pneg %p191
      %p355 = pneg %p188
      %p356 = pneg %p212
      %p357 = pneg %p209
      %p358 = pneg %p233
      %p359 = pneg %p230
      %p360 = pneg %p261
      %p361 = pneg %p258
      %p362 = scmp.lt.s32.totalorder %s24, 1
      %s363 = scalar_select %p362, %s24, 1
      %p364 = scmp.lt.s32.totalorder %s25, 0
      %s365 = scalar_select %p364, %s25, 0
      %s366 = sadd.s32 %s365, %s363
      %s367 = smul.addr %s366, 4
      %s368 = scalar_lea.vmem %s9, %s367
      %p369 = scmp.lt.s32.totalorder %s24, 1
      %s370 = scalar_select %p369, %s24, 1
      %p371 = scmp.lt.s32.totalorder %s25, 0
      %s372 = scalar_select %p371, %s25, 0
      %s373 = sadd.s32 %s372, %s370
      %s374 = smul.addr %s373, 4
      %s375 = scalar_lea.vmem %s0, %s374
      %p376 = scmp.lt.s32.totalorder %s24, 1
      %s377 = scalar_select %p376, %s24, 1
      %s378 = smul.addr %s377, 4
      %s379 = scalar_lea.vmem %s1, %s378
      %p380 = scmp.lt.s32.totalorder %s24, 1
      %s381 = scalar_select %p380, %s24, 1
      %s382 = scalar_lea.vmem %s2, %s381
      %p383 = scmp.lt.s32.totalorder %s24, 1
      %s384 = scalar_select %p383, %s24, 1
      %p385 = scmp.lt.s32.totalorder %s25, 0
      %s386 = scalar_select %p385, %s25, 0
      %s387 = sadd.s32 %s386, %s384
      %s388 = smul.addr %s387, 4
      %s389 = scalar_lea.vmem %s9, %s388
      %v391 = vld [vmem:[%s375] sm:$0xf]
      %v392 = vld [vmem:[%s379] sm:$0xf]
      %v393 = vld [vmem:[%s382] sm:$0x1]
      %vm394 = vcmp.eq.f32.partialorder %v393, 0.0
      %v395 = vld [vmem:[%s3] sm:$0xf]
      %v396 = vld [vmem:[%s3 + $0x4] sm:$0xf]
      %v397 = vld [vmem:[%s3 + $0x8] sm:$0xf]
      %v398 = vld [vmem:[%s3 + $0xc] sm:$0xf]
      %v403 = vunpack.c.l.b16 %v395
      %v404 = vunpack.c.l.b16 %v396
      %v405 = vunpack.c.l.b16 %v397
      %v406 = vunpack.c.l.b16 %v398
      %v407 = vpack.c.b16 %v404, %v403
      %v408 = vpack.c.b16 %v406, %v405
      %vm411 = vcmask 261120
      %v413 = vsel %vm411, %v391, 0
      %415 = vmatprep.subr.bf16.mxu0 0
      %416 = vmatpush1.bf16.msra.mxu0 %v407
      %417 = vmatprep.subr.bf16.mxu0 0
      %418 = vmatpush1.bf16.msra.mxu0 %v408
      %419 = vmatprep.subr.bf16.mxu0 0
      %420 = vmatpush1.bf16.msra.mxu0 0
      %421 = vmatprep.subr.bf16.mxu0 0
      %422 = vmatpush1.bf16.msra.mxu0 0
      %423 = vmatprep.subr.bf16.mxu0 0
      %424 = vmatpush1.bf16.msra.mxu0 0
      %425 = vmatprep.subr.bf16.mxu0 0
      %426 = vmatpush1.bf16.msra.mxu0 0
      %427 = vmatprep.subr.bf16.mxu0 0
      %428 = vmatpush1.bf16.msra.mxu0 0
      %429 = vmatprep.subr.bf16.mxu0 0
      %430 = vmatpush1.bf16.msra.mxu0 0
      %431 = vmatprep.subr.bf16.mxu0 0
      %432 = vmatpush1.bf16.msra.mxu0 0
      %433 = vmatprep.subr.bf16.mxu0 0
      %434 = vmatpush1.bf16.msra.mxu0 0
      %435 = vmatprep.subr.bf16.mxu0 0
      %436 = vmatpush1.bf16.msra.mxu0 0
      %437 = vmatprep.subr.bf16.mxu0 0
      %438 = vmatpush1.bf16.msra.mxu0 0
      %439 = vmatprep.subr.bf16.mxu0 0
      %440 = vmatpush1.bf16.msra.mxu0 0
      %441 = vmatprep.subr.bf16.mxu0 0
      %442 = vmatpush1.bf16.msra.mxu0 0
      %443 = vmatprep.subr.bf16.mxu0 0
      %444 = vmatpush1.bf16.msra.mxu0 0
      %445 = vmatprep.subr.bf16.mxu0 0
      %446 = vmatpush1.bf16.msra.mxu0 0
      %447 = vmatprep.mubr.bf16.mxu0 0
      %448 = vmatmul.mubr.bf16.gmra.mrb[0].mxu0 %v413
      %v449 = vpop.f32.mrb[0].mxu0
      %v450 = vadd.f32 0.0, %v449
      %v451 = vpop.f32.mrb[0].mxu0
      %v452 = vpop.f32.mrb[0].mxu0
      %v453 = vpop.f32.mrb[0].mxu0
      %454 = vdwg.mxu0
      %v455 = vpack.c.bf16 %v450, %v450
      %v456 = vld [vmem:[%s4] sm:$0xf]
      %v457 = vld [vmem:[%s4 + $0x4] sm:$0xf]
      %v458 = vld [vmem:[%s4 + $0x8] sm:$0xf]
      %v459 = vld [vmem:[%s4 + $0xc] sm:$0xf]
      %v464 = vunpack.c.l.b16 %v456
      %v465 = vunpack.c.l.b16 %v457
      %v466 = vunpack.c.l.b16 %v458
      %v467 = vunpack.c.l.b16 %v459
      %v468 = vpack.c.b16 %v465, %v464
      %v469 = vpack.c.b16 %v467, %v466
      %v473 = vsel %vm411, %v392, 0
      %475 = vmatprep.subr.bf16.mxu0 0
      %476 = vmatpush1.bf16.msra.mxu0 %v468
      %477 = vmatprep.subr.bf16.mxu0 0
      %478 = vmatpush1.bf16.msra.mxu0 %v469
      %479 = vmatprep.subr.bf16.mxu0 0
      %480 = vmatpush1.bf16.msra.mxu0 0
      %481 = vmatprep.subr.bf16.mxu0 0
      %482 = vmatpush1.bf16.msra.mxu0 0
      %483 = vmatprep.subr.bf16.mxu0 0
      %484 = vmatpush1.bf16.msra.mxu0 0
      %485 = vmatprep.subr.bf16.mxu0 0
      %486 = vmatpush1.bf16.msra.mxu0 0
      %487 = vmatprep.subr.bf16.mxu0 0
      %488 = vmatpush1.bf16.msra.mxu0 0
      %489 = vmatprep.subr.bf16.mxu0 0
      %490 = vmatpush1.bf16.msra.mxu0 0
      %491 = vmatprep.subr.bf16.mxu0 0
      %492 = vmatpush1.bf16.msra.mxu0 0
      %493 = vmatprep.subr.bf16.mxu0 0
      %494 = vmatpush1.bf16.msra.mxu0 0
      %495 = vmatprep.subr.bf16.mxu0 0
      %496 = vmatpush1.bf16.msra.mxu0 0
      %497 = vmatprep.subr.bf16.mxu0 0
      %498 = vmatpush1.bf16.msra.mxu0 0
      %499 = vmatprep.subr.bf16.mxu0 0
      %500 = vmatpush1.bf16.msra.mxu0 0
      %501 = vmatprep.subr.bf16.mxu0 0
      %502 = vmatpush1.bf16.msra.mxu0 0
      %503 = vmatprep.subr.bf16.mxu0 0
      %504 = vmatpush1.bf16.msra.mxu0 0
      %505 = vmatprep.subr.bf16.mxu0 0
      %506 = vmatpush1.bf16.msra.mxu0 0
      %507 = vmatprep.mubr.bf16.mxu0 0
      %508 = vmatmul.mubr.bf16.gmra.mrb[0].mxu0 %v473
      %v509 = vpop.f32.mrb[0].mxu0
      %v510 = vadd.f32 0.0, %v509
      %v511 = vpop.f32.mrb[0].mxu0
      %v512 = vpop.f32.mrb[0].mxu0
      %v513 = vpop.f32.mrb[0].mxu0
      %514 = vdwg.mxu0
      %v515 = vpack.c.bf16 %v510, %v510
      %vm516 = vcmask 64512
      %v518 = vsel %vm516, %v455, 0
      %v521 = vsel %vm516, %v515, 0
      %523 = vmatprep.subr.bf16.mxu0 0
      %524 = vmatpush1.bf16.xpose.msra.mxu0 %v521
      %525 = vmatprep.subr.bf16.mxu0 0
      %526 = vmatpush1.bf16.xpose.msra.mxu0 0
      %527 = vmatprep.subr.bf16.mxu0 0
      %528 = vmatpush1.bf16.xpose.msra.mxu0 0
      %529 = vmatprep.subr.bf16.mxu0 0
      %530 = vmatpush1.bf16.xpose.msra.mxu0 0
      %531 = vmatprep.subr.bf16.mxu0 0
      %532 = vmatpush1.bf16.xpose.msra.mxu0 0
      %533 = vmatprep.subr.bf16.mxu0 0
      %534 = vmatpush1.bf16.xpose.msra.mxu0 0
      %535 = vmatprep.subr.bf16.mxu0 0
      %536 = vmatpush1.bf16.xpose.msra.mxu0 0
      %537 = vmatprep.subr.bf16.mxu0 0
      %538 = vmatpush1.bf16.xpose.msra.mxu0 0
      %539 = vmatprep.subr.bf16.mxu0 0
      %540 = vmatpush1.bf16.xpose.msra.mxu0 0
      %541 = vmatprep.subr.bf16.mxu0 0
      %542 = vmatpush1.bf16.xpose.msra.mxu0 0
      %543 = vmatprep.subr.bf16.mxu0 0
      %544 = vmatpush1.bf16.xpose.msra.mxu0 0
      %545 = vmatprep.subr.bf16.mxu0 0
      %546 = vmatpush1.bf16.xpose.msra.mxu0 0
      %547 = vmatprep.subr.bf16.mxu0 0
      %548 = vmatpush1.bf16.xpose.msra.mxu0 0
      %549 = vmatprep.subr.bf16.mxu0 0
      %550 = vmatpush1.bf16.xpose.msra.mxu0 0
      %551 = vmatprep.subr.bf16.mxu0 0
      %552 = vmatpush1.bf16.xpose.msra.mxu0 0
      %553 = vmatprep.subr.bf16.mxu0 0
      %554 = vmatpush1.bf16.xpose.msra.mxu0 0
      %555 = vmatprep.mubr.bf16.mxu0 0
      %556 = vmatmul.mubr.bf16.gmra.mrb[0].mxu0 %v518
      %v557 = vpop.f32.mrb[0].mxu0
      %v558 = vadd.f32 0.0, %v557
      %v559 = vpop.f32.mrb[0].mxu0
      %v560 = vpop.f32.mrb[0].mxu0
      %v561 = vpop.f32.mrb[0].mxu0
      %562 = vdwg.mxu0
      %v563 = vsel %vm394, 1, 0
      %v564 = vlaneseq
      %v565 = vshrl.u32 %v564, 7
      %v566 = vsub.s32 0, %v565
      %v567 = vrot.slane %v563, %v566
      %vm568 = vcmp.eq.s32.totalorder %v567, 1
      %v569 = vsel %vm568, -1.767767e+19, %v558
      %v570 = vsel %vm516, %v569, -inf
      %571 = vmax.xlane.f32.xlu0 %v570
      %v572 = vpop.xlane.xlu0 %571
      %v573 = vsub.f32 %v569, %v572
      %v574 = vmul.f32 %v573, 1.442695
      %v575 = vpow.pop %v574
      %v576 = vsel %vm516, %v575, 0.0
      %577 = vadd.xlane.f32.xlu0 %v576
      %v578 = vpop.xlane.xlu0 %577
      %v579 = vrcp.pop %v578
      %v580 = vmul.f32 %v575, %v579
      %v581 = vpack.c.bf16 %v580, %v580
      %583 = vrot.lane.b32.xlu0 %v515, 96
      %v584 = vpop.permute.xlu0 %583
      %v586 = vsel %vm516, %v581, 0
      %vm588 = vcmask 1043456
      %v590 = vsel %vm588, %v584, 0
      %592 = vmatprep.subr.bf16.mxu0 0
      %593 = vmatpush1.bf16.msra.mxu0 %v590
      %594 = vmatprep.subr.bf16.mxu0 0
      %595 = vmatpush1.bf16.msra.mxu0 0
      %596 = vmatprep.subr.bf16.mxu0 0
      %597 = vmatpush1.bf16.msra.mxu0 0
      %598 = vmatprep.subr.bf16.mxu0 0
      %599 = vmatpush1.bf16.msra.mxu0 0
      %600 = vmatprep.subr.bf16.mxu0 0
      %601 = vmatpush1.bf16.msra.mxu0 0
      %602 = vmatprep.subr.bf16.mxu0 0
      %603 = vmatpush1.bf16.msra.mxu0 0
      %604 = vmatprep.subr.bf16.mxu0 0
      %605 = vmatpush1.bf16.msra.mxu0 0
      %606 = vmatprep.subr.bf16.mxu0 0
      %607 = vmatpush1.bf16.msra.mxu0 0
      %608 = vmatprep.subr.bf16.mxu0 0
      %609 = vmatpush1.bf16.msra.mxu0 0
      %610 = vmatprep.subr.bf16.mxu0 0
      %611 = vmatpush1.bf16.msra.mxu0 0
      %612 = vmatprep.subr.bf16.mxu0 0
      %613 = vmatpush1.bf16.msra.mxu0 0
      %614 = vmatprep.subr.bf16.mxu0 0
      %615 = vmatpush1.bf16.msra.mxu0 0
      %616 = vmatprep.subr.bf16.mxu0 0
      %617 = vmatpush1.bf16.msra.mxu0 0
      %618 = vmatprep.subr.bf16.mxu0 0
      %619 = vmatpush1.bf16.msra.mxu0 0
      %620 = vmatprep.subr.bf16.mxu0 0
      %621 = vmatpush1.bf16.msra.mxu0 0
      %622 = vmatprep.subr.bf16.mxu0 0
      %623 = vmatpush1.bf16.msra.mxu0 0
      %624 = vmatprep.mubr.bf16.mxu0 0
      %625 = vmatmul.mubr.bf16.gmra.mrb[0].mxu0 %v586
      %v626 = vpop.f32.mrb[0].mxu0
      %v627 = vadd.f32 0.0, %v626
      %v628 = vpop.f32.mrb[0].mxu0
      %v629 = vpop.f32.mrb[0].mxu0
      %v630 = vpop.f32.mrb[0].mxu0
      %631 = vdwg.mxu0
      %633 = vrot.lane.b32.xlu0 %v455, 120
      %v634 = vpop.permute.xlu0 %633
      %635 = vrot.lane.b32.xlu0 %v515, 120
      %v636 = vpop.permute.xlu0 %635
      %v638 = vsel %vm516, %v634, 0
      %v641 = vsel %vm516, %v636, 0
      %643 = vmatprep.subr.bf16.mxu0 0
      %644 = vmatpush1.bf16.xpose.msra.mxu0 %v641
      %645 = vmatprep.subr.bf16.mxu0 0
      %646 = vmatpush1.bf16.xpose.msra.mxu0 0
      %647 = vmatprep.subr.bf16.mxu0 0
      %648 = vmatpush1.bf16.xpose.msra.mxu0 0
      %649 = vmatprep.subr.bf16.mxu0 0
      %650 = vmatpush1.bf16.xpose.msra.mxu0 0
      %651 = vmatprep.subr.bf16.mxu0 0
      %652 = vmatpush1.bf16.xpose.msra.mxu0 0
      %653 = vmatprep.subr.bf16.mxu0 0
      %654 = vmatpush1.bf16.xpose.msra.mxu0 0
      %655 = vmatprep.subr.bf16.mxu0 0
      %656 = vmatpush1.bf16.xpose.msra.mxu0 0
      %657 = vmatprep.subr.bf16.mxu0 0
      %658 = vmatpush1.bf16.xpose.msra.mxu0 0
      %659 = vmatprep.subr.bf16.mxu0 0
      %660 = vmatpush1.bf16.xpose.msra.mxu0 0
      %661 = vmatprep.subr.bf16.mxu0 0
      %662 = vmatpush1.bf16.xpose.msra.mxu0 0
      %663 = vmatprep.subr.bf16.mxu0 0
      %664 = vmatpush1.bf16.xpose.msra.mxu0 0
      %665 = vmatprep.subr.bf16.mxu0 0
      %666 = vmatpush1.bf16.xpose.msra.mxu0 0
      %667 = vmatprep.subr.bf16.mxu0 0
      %668 = vmatpush1.bf16.xpose.msra.mxu0 0
      %669 = vmatprep.subr.bf16.mxu0 0
      %670 = vmatpush1.bf16.xpose.msra.mxu0 0
      %671 = vmatprep.subr.bf16.mxu0 0
      %672 = vmatpush1.bf16.xpose.msra.mxu0 0
      %673 = vmatprep.subr.bf16.mxu0 0
      %674 = vmatpush1.bf16.xpose.msra.mxu0 0
      %675 = vmatprep.mubr.bf16.mxu0 0
      %676 = vmatmul.mubr.bf16.gmra.mrb[0].mxu0 %v638
      %v677 = vpop.f32.mrb[0].mxu0
      %v678 = vadd.f32 0.0, %v677
      %v679 = vpop.f32.mrb[0].mxu0
      %v680 = vpop.f32.mrb[0].mxu0
      %v681 = vpop.f32.mrb[0].mxu0
      %682 = vdwg.mxu0
      %v683 = vsel %vm568, -1.767767e+19, %v678
      %v684 = vsel %vm516, %v683, -inf
      %685 = vmax.xlane.f32.xlu0 %v684
      %v686 = vpop.xlane.xlu0 %685
      %v687 = vsub.f32 %v683, %v686
      %v688 = vmul.f32 %v687, 1.442695
      %v689 = vpow.pop %v688
      %v690 = vsel %vm516, %v689, 0.0
      %691 = vadd.xlane.f32.xlu0 %v690
      %v692 = vpop.xlane.xlu0 %691
      %v693 = vrcp.pop %v692
      %v694 = vmul.f32 %v689, %v693
      %v695 = vpack.c.bf16 %v694, %v694
      %696 = vrot.lane.b32.xlu0 %v515, 88
      %v697 = vpop.permute.xlu0 %696
      %v699 = vsel %vm516, %v695, 0
      %v702 = vsel %vm588, %v697, 0
      %704 = vmatprep.subr.bf16.mxu0 0
      %705 = vmatpush1.bf16.msra.mxu0 %v702
      %706 = vmatprep.subr.bf16.mxu0 0
      %707 = vmatpush1.bf16.msra.mxu0 0
      %708 = vmatprep.subr.bf16.mxu0 0
      %709 = vmatpush1.bf16.msra.mxu0 0
      %710 = vmatprep.subr.bf16.mxu0 0
      %711 = vmatpush1.bf16.msra.mxu0 0
      %712 = vmatprep.subr.bf16.mxu0 0
      %713 = vmatpush1.bf16.msra.mxu0 0
      %714 = vmatprep.subr.bf16.mxu0 0
      %715 = vmatpush1.bf16.msra.mxu0 0
      %716 = vmatprep.subr.bf16.mxu0 0
      %717 = vmatpush1.bf16.msra.mxu0 0
      %718 = vmatprep.subr.bf16.mxu0 0
      %719 = vmatpush1.bf16.msra.mxu0 0
      %720 = vmatprep.subr.bf16.mxu0 0
      %721 = vmatpush1.bf16.msra.mxu0 0
      %722 = vmatprep.subr.bf16.mxu0 0
      %723 = vmatpush1.bf16.msra.mxu0 0
      %724 = vmatprep.subr.bf16.mxu0 0
      %725 = vmatpush1.bf16.msra.mxu0 0
      %726 = vmatprep.subr.bf16.mxu0 0
      %727 = vmatpush1.bf16.msra.mxu0 0
      %728 = vmatprep.subr.bf16.mxu0 0
      %729 = vmatpush1.bf16.msra.mxu0 0
      %730 = vmatprep.subr.bf16.mxu0 0
      %731 = vmatpush1.bf16.msra.mxu0 0
      %732 = vmatprep.subr.bf16.mxu0 0
      %733 = vmatpush1.bf16.msra.mxu0 0
      %734 = vmatprep.subr.bf16.mxu0 0
      %735 = vmatpush1.bf16.msra.mxu0 0
      %736 = vmatprep.mubr.bf16.mxu0 0
      %737 = vmatmul.mubr.bf16.gmra.mrb[0].mxu0 %v699
      %v738 = vpop.f32.mrb[0].mxu0
      %v739 = vadd.f32 0.0, %v738
      %v740 = vpop.f32.mrb[0].mxu0
      %v741 = vpop.f32.mrb[0].mxu0
      %v742 = vpop.f32.mrb[0].mxu0
      %743 = vdwg.mxu0
      %744 = vrot.lane.b32.xlu0 %v455, 112
      %v745 = vpop.permute.xlu0 %744
      %746 = vrot.lane.b32.xlu0 %v515, 112
      %v747 = vpop.permute.xlu0 %746
      %v749 = vsel %vm516, %v745, 0
      %v752 = vsel %vm516, %v747, 0
      %754 = vmatprep.subr.bf16.mxu0 0
      %755 = vmatpush1.bf16.xpose.msra.mxu0 %v752
      %756 = vmatprep.subr.bf16.mxu0 0
      %757 = vmatpush1.bf16.xpose.msra.mxu0 0
      %758 = vmatprep.subr.bf16.mxu0 0
      %759 = vmatpush1.bf16.xpose.msra.mxu0 0
      %760 = vmatprep.subr.bf16.mxu0 0
      %761 = vmatpush1.bf16.xpose.msra.mxu0 0
      %762 = vmatprep.subr.bf16.mxu0 0
      %763 = vmatpush1.bf16.xpose.msra.mxu0 0
      %764 = vmatprep.subr.bf16.mxu0 0
      %765 = vmatpush1.bf16.xpose.msra.mxu0 0
      %766 = vmatprep.subr.bf16.mxu0 0
      %767 = vmatpush1.bf16.xpose.msra.mxu0 0
      %768 = vmatprep.subr.bf16.mxu0 0
      %769 = vmatpush1.bf16.xpose.msra.mxu0 0
      %770 = vmatprep.subr.bf16.mxu0 0
      %771 = vmatpush1.bf16.xpose.msra.mxu0 0
      %772 = vmatprep.subr.bf16.mxu0 0
      %773 = vmatpush1.bf16.xpose.msra.mxu0 0
      %774 = vmatprep.subr.bf16.mxu0 0
      %775 = vmatpush1.bf16.xpose.msra.mxu0 0
      %776 = vmatprep.subr.bf16.mxu0 0
      %777 = vmatpush1.bf16.xpose.msra.mxu0 0
      %778 = vmatprep.subr.bf16.mxu0 0
      %779 = vmatpush1.bf16.xpose.msra.mxu0 0
      %780 = vmatprep.subr.bf16.mxu0 0
      %781 = vmatpush1.bf16.xpose.msra.mxu0 0
      %782 = vmatprep.subr.bf16.mxu0 0
      %783 = vmatpush1.bf16.xpose.msra.mxu0 0
      %784 = vmatprep.subr.bf16.mxu0 0
      %785 = vmatpush1.bf16.xpose.msra.mxu0 0
      %786 = vmatprep.mubr.bf16.mxu0 0
      %787 = vmatmul.mubr.bf16.gmra.mrb[0].mxu0 %v749
      %v788 = vpop.f32.mrb[0].mxu0
      %v789 = vadd.f32 0.0, %v788
      %v790 = vpop.f32.mrb[0].mxu0
      %v791 = vpop.f32.mrb[0].mxu0
      %v792 = vpop.f32.mrb[0].mxu0
      %793 = vdwg.mxu0
      %v794 = vsel %vm568, -1.767767e+19, %v789
      %v795 = vsel %vm516, %v794, -inf
      %796 = vmax.xlane.f32.xlu0 %v795
      %v797 = vpop.xlane.xlu0 %796
      %v798 = vsub.f32 %v794, %v797
      %v799 = vmul.f32 %v798, 1.442695
      %v800 = vpow.pop %v799
      %v801 = vsel %vm516, %v800, 0.0
      %802 = vadd.xlane.f32.xlu0 %v801
      %v803 = vpop.xlane.xlu0 %802
      %v804 = vrcp.pop %v803
      %v805 = vmul.f32 %v800, %v804
      %v806 = vpack.c.bf16 %v805, %v805
      %807 = vrot.lane.b32.xlu0 %v515, 80
      %v808 = vpop.permute.xlu0 %807
      %v810 = vsel %vm516, %v806, 0
      %v813 = vsel %vm588, %v808, 0
      %815 = vmatprep.subr.bf16.mxu0 0
      %816 = vmatpush1.bf16.msra.mxu0 %v813
      %817 = vmatprep.subr.bf16.mxu0 0
      %818 = vmatpush1.bf16.msra.mxu0 0
      %819 = vmatprep.subr.bf16.mxu0 0
      %820 = vmatpush1.bf16.msra.mxu0 0
      %821 = vmatprep.subr.bf16.mxu0 0
      %822 = vmatpush1.bf16.msra.mxu0 0
      %823 = vmatprep.subr.bf16.mxu0 0
      %824 = vmatpush1.bf16.msra.mxu0 0
      %825 = vmatprep.subr.bf16.mxu0 0
      %826 = vmatpush1.bf16.msra.mxu0 0
      %827 = vmatprep.subr.bf16.mxu0 0
      %828 = vmatpush1.bf16.msra.mxu0 0
      %829 = vmatprep.subr.bf16.mxu0 0
      %830 = vmatpush1.bf16.msra.mxu0 0
      %831 = vmatprep.subr.bf16.mxu0 0
      %832 = vmatpush1.bf16.msra.mxu0 0
      %833 = vmatprep.subr.bf16.mxu0 0
      %834 = vmatpush1.bf16.msra.mxu0 0
      %835 = vmatprep.subr.bf16.mxu0 0
      %836 = vmatpush1.bf16.msra.mxu0 0
      %837 = vmatprep.subr.bf16.mxu0 0
      %838 = vmatpush1.bf16.msra.mxu0 0
      %839 = vmatprep.subr.bf16.mxu0 0
      %840 = vmatpush1.bf16.msra.mxu0 0
      %841 = vmatprep.subr.bf16.mxu0 0
      %842 = vmatpush1.bf16.msra.mxu0 0
      %843 = vmatprep.subr.bf16.mxu0 0
      %844 = vmatpush1.bf16.msra.mxu0 0
      %845 = vmatprep.subr.bf16.mxu0 0
      %846 = vmatpush1.bf16.msra.mxu0 0
      %847 = vmatprep.mubr.bf16.mxu0 0
      %848 = vmatmul.mubr.bf16.gmra.mrb[0].mxu0 %v810
      %v849 = vpop.f32.mrb[0].mxu0
      %v850 = vadd.f32 0.0, %v849
      %v851 = vpop.f32.mrb[0].mxu0
      %v852 = vpop.f32.mrb[0].mxu0
      %v853 = vpop.f32.mrb[0].mxu0
      %854 = vdwg.mxu0
      %855 = vrot.lane.b32.xlu0 %v455, 104
      %v856 = vpop.permute.xlu0 %855
      %857 = vrot.lane.b32.xlu0 %v515, 104
      %v858 = vpop.permute.xlu0 %857
      %v860 = vsel %vm516, %v856, 0
      %v863 = vsel %vm516, %v858, 0
      %865 = vmatprep.subr.bf16.mxu0 0
      %866 = vmatpush1.bf16.xpose.msra.mxu0 %v863
      %867 = vmatprep.subr.bf16.mxu0 0
      %868 = vmatpush1.bf16.xpose.msra.mxu0 0
      %869 = vmatprep.subr.bf16.mxu0 0
      %870 = vmatpush1.bf16.xpose.msra.mxu0 0
      %871 = vmatprep.subr.bf16.mxu0 0
      %872 = vmatpush1.bf16.xpose.msra.mxu0 0
      %873 = vmatprep.subr.bf16.mxu0 0
      %874 = vmatpush1.bf16.xpose.msra.mxu0 0
      %875 = vmatprep.subr.bf16.mxu0 0
      %876 = vmatpush1.bf16.xpose.msra.mxu0 0
      %877 = vmatprep.subr.bf16.mxu0 0
      %878 = vmatpush1.bf16.xpose.msra.mxu0 0
      %879 = vmatprep.subr.bf16.mxu0 0
      %880 = vmatpush1.bf16.xpose.msra.mxu0 0
      %881 = vmatprep.subr.bf16.mxu0 0
      %882 = vmatpush1.bf16.xpose.msra.mxu0 0
      %883 = vmatprep.subr.bf16.mxu0 0
      %884 = vmatpush1.bf16.xpose.msra.mxu0 0
      %885 = vmatprep.subr.bf16.mxu0 0
      %886 = vmatpush1.bf16.xpose.msra.mxu0 0
      %887 = vmatprep.subr.bf16.mxu0 0
      %888 = vmatpush1.bf16.xpose.msra.mxu0 0
      %889 = vmatprep.subr.bf16.mxu0 0
      %890 = vmatpush1.bf16.xpose.msra.mxu0 0
      %891 = vmatprep.subr.bf16.mxu0 0
      %892 = vmatpush1.bf16.xpose.msra.mxu0 0
      %893 = vmatprep.subr.bf16.mxu0 0
      %894 = vmatpush1.bf16.xpose.msra.mxu0 0
      %895 = vmatprep.subr.bf16.mxu0 0
      %896 = vmatpush1.bf16.xpose.msra.mxu0 0
      %897 = vmatprep.mubr.bf16.mxu0 0
      %898 = vmatmul.mubr.bf16.gmra.mrb[0].mxu0 %v860
      %v899 = vpop.f32.mrb[0].mxu0
      %v900 = vadd.f32 0.0, %v899
      %v901 = vpop.f32.mrb[0].mxu0
      %v902 = vpop.f32.mrb[0].mxu0
      %v903 = vpop.f32.mrb[0].mxu0
      %904 = vdwg.mxu0
      %v905 = vsel %vm568, -1.767767e+19, %v900
      %v906 = vsel %vm516, %v905, -inf
      %907 = vmax.xlane.f32.xlu0 %v906
      %v908 = vpop.xlane.xlu0 %907
      %v909 = vsub.f32 %v905, %v908
      %v910 = vmul.f32 %v909, 1.442695
      %v911 = vpow.pop %v910
      %v912 = vsel %vm516, %v911, 0.0
      %913 = vadd.xlane.f32.xlu0 %v912
      %v914 = vpop.xlane.xlu0 %913
      %v915 = vrcp.pop %v914
      %v916 = vmul.f32 %v911, %v915
      %v917 = vpack.c.bf16 %v916, %v916
      %918 = vrot.lane.b32.xlu0 %v515, 72
      %v919 = vpop.permute.xlu0 %918
      %v921 = vsel %vm516, %v917, 0
      %v924 = vsel %vm588, %v919, 0
      %926 = vmatprep.subr.bf16.mxu0 0
      %927 = vmatpush1.bf16.msra.mxu0 %v924
      %928 = vmatprep.subr.bf16.mxu0 0
      %929 = vmatpush1.bf16.msra.mxu0 0
      %930 = vmatprep.subr.bf16.mxu0 0
      %931 = vmatpush1.bf16.msra.mxu0 0
      %932 = vmatprep.subr.bf16.mxu0 0
      %933 = vmatpush1.bf16.msra.mxu0 0
      %934 = vmatprep.subr.bf16.mxu0 0
      %935 = vmatpush1.bf16.msra.mxu0 0
      %936 = vmatprep.subr.bf16.mxu0 0
      %937 = vmatpush1.bf16.msra.mxu0 0
      %938 = vmatprep.subr.bf16.mxu0 0
      %939 = vmatpush1.bf16.msra.mxu0 0
      %940 = vmatprep.subr.bf16.mxu0 0
      %941 = vmatpush1.bf16.msra.mxu0 0
      %942 = vmatprep.subr.bf16.mxu0 0
      %943 = vmatpush1.bf16.msra.mxu0 0
      %944 = vmatprep.subr.bf16.mxu0 0
      %945 = vmatpush1.bf16.msra.mxu0 0
      %946 = vmatprep.subr.bf16.mxu0 0
      %947 = vmatpush1.bf16.msra.mxu0 0
      %948 = vmatprep.subr.bf16.mxu0 0
      %949 = vmatpush1.bf16.msra.mxu0 0
      %950 = vmatprep.subr.bf16.mxu0 0
      %951 = vmatpush1.bf16.msra.mxu0 0
      %952 = vmatprep.subr.bf16.mxu0 0
      %953 = vmatpush1.bf16.msra.mxu0 0
      %954 = vmatprep.subr.bf16.mxu0 0
      %955 = vmatpush1.bf16.msra.mxu0 0
      %956 = vmatprep.subr.bf16.mxu0 0
      %957 = vmatpush1.bf16.msra.mxu0 0
      %958 = vmatprep.mubr.bf16.mxu0 0
      %959 = vmatmul.mubr.bf16.gmra.mrb[0].mxu0 %v921
      %v960 = vpop.f32.mrb[0].mxu0
      %v961 = vadd.f32 0.0, %v960
      %v962 = vpop.f32.mrb[0].mxu0
      %v963 = vpop.f32.mrb[0].mxu0
      %v964 = vpop.f32.mrb[0].mxu0
      %965 = vdwg.mxu0
      %967 = vrot.lane.b32.xlu0 %v739, 8
      %v968 = vpop.permute.xlu0 %967
      %971 = vrot.lane.b32.xlu0 %v850, 16
      %v972 = vpop.permute.xlu0 %971
      %975 = vrot.lane.b32.xlu0 %v961, 24
      %v976 = vpop.permute.xlu0 %975
      %v978 = vsel %vm516, %v627, %v968
      %vm979 = vcmask 130048
      %v980 = vsel %vm979, %v978, %v972
      %vm981 = vcmask 195584
      %v982 = vsel %vm981, %v980, %v976
      %v983 = vpack.c.bf16 %v982, %v982
      %v984 = vld [vmem:[%s5] sm:$0xf]
      %v985 = vld [vmem:[%s5 + $0x4] sm:$0xf]
      %v986 = vld [vmem:[%s5 + $0x8] sm:$0xf]
      %v987 = vld [vmem:[%s5 + $0xc] sm:$0xf]
      %v988 = vld [vmem:[%s6] sm:$0x1]
      %v990 = vlaneseq
      %v991 = vshrl.u32 %v990, 7
      %v992 = vsub.s32 0, %v991
      %v993 = vrot.slane %v988, %v992
      %v999 = vunpack.c.l.b16 %v984
      %v1000 = vunpack.c.l.b16 %v985
      %v1001 = vunpack.c.l.b16 %v986
      %v1002 = vunpack.c.l.b16 %v987
      %v1003 = vpack.c.b16 %v1000, %v999
      %v1004 = vpack.c.b16 %v1002, %v1001
      %v1008 = vsel %vm411, %v983, 0
      %1010 = vmatprep.subr.bf16.mxu0 0
      %1011 = vmatpush1.bf16.msra.mxu0 %v1003
      %1012 = vmatprep.subr.bf16.mxu0 0
      %1013 = vmatpush1.bf16.msra.mxu0 %v1004
      %1014 = vmatprep.subr.bf16.mxu0 0
      %1015 = vmatpush1.bf16.msra.mxu0 0
      %1016 = vmatprep.subr.bf16.mxu0 0
      %1017 = vmatpush1.bf16.msra.mxu0 0
      %1018 = vmatprep.subr.bf16.mxu0 0
      %1019 = vmatpush1.bf16.msra.mxu0 0
      %1020 = vmatprep.subr.bf16.mxu0 0
      %1021 = vmatpush1.bf16.msra.mxu0 0
      %1022 = vmatprep.subr.bf16.mxu0 0
      %1023 = vmatpush1.bf16.msra.mxu0 0
      %1024 = vmatprep.subr.bf16.mxu0 0
      %1025 = vmatpush1.bf16.msra.mxu0 0
      %1026 = vmatprep.subr.bf16.mxu0 0
      %1027 = vmatpush1.bf16.msra.mxu0 0
      %1028 = vmatprep.subr.bf16.mxu0 0
      %1029 = vmatpush1.bf16.msra.mxu0 0
      %1030 = vmatprep.subr.bf16.mxu0 0
      %1031 = vmatpush1.bf16.msra.mxu0 0
      %1032 = vmatprep.subr.bf16.mxu0 0
      %1033 = vmatpush1.bf16.msra.mxu0 0
      %1034 = vmatprep.subr.bf16.mxu0 0
      %1035 = vmatpush1.bf16.msra.mxu0 0
      %1036 = vmatprep.subr.bf16.mxu0 0
      %1037 = vmatpush1.bf16.msra.mxu0 0
      %1038 = vmatprep.subr.bf16.mxu0 0
      %1039 = vmatpush1.bf16.msra.mxu0 0
      %1040 = vmatprep.subr.bf16.mxu0 0
      %1041 = vmatpush1.bf16.msra.mxu0 0
      %1042 = vmatprep.mubr.bf16.mxu0 0
      %1043 = vmatmul.mubr.bf16.gmra.mrb[0].mxu0 %v1008
      %v1044 = vpop.f32.mrb[0].mxu0
      %v1045 = vadd.f32 %v993, %v1044
      %v1046 = vpop.f32.mrb[0].mxu0
      %v1047 = vpop.f32.mrb[0].mxu0
      %v1048 = vpop.f32.mrb[0].mxu0
      %1049 = vdwg.mxu0
      %v1050 = vunpack.c.l.bf16 %v391
      %v1051 = vadd.f32 %v1045, %v1050
      %v1052 = vsel %vm411, %v1051, 0.0
      %1053 = vadd.xlane.f32.xlu0 %v1052
      %v1054 = vpop.xlane.xlu0 %1053
      %v1055 = vrcp.pop 32.0
      %v1056 = vmul.f32 %v1054, %v1055
      %v1057 = vsub.f32 %v1051, %v1056
      %v1058 = vmul.f32 %v1057, %v1057
      %v1059 = vsel %vm411, %v1058, 0.0
      %1060 = vadd.xlane.f32.xlu0 %v1059
      %v1061 = vpop.xlane.xlu0 %1060
      %v1062 = vmul.f32 %v1061, %v1055
      %v1063 = vadd.f32 %v1062, 1e-05
      %v1064 = vrsqrt.pop %v1063
      %v1065 = vmul.f32 %v1057, %v1064
      %v1066 = vld [vmem:[%s7] sm:$0x1]
      %v1068 = vlaneseq
      %v1069 = vshrl.u32 %v1068, 7
      %v1070 = vsub.s32 0, %v1069
      %v1071 = vrot.slane %v1066, %v1070
      %v1073 = vmul.f32 %v1065, %v1071
      %v1074 = vld [vmem:[%s8] sm:$0x1]
      %v1076 = vlaneseq
      %v1077 = vshrl.u32 %v1076, 7
      %v1078 = vsub.s32 0, %v1077
      %v1079 = vrot.slane %v1074, %v1078
      %v1081 = vadd.f32 %v1073, %v1079
      %v1082 = vpack.c.bf16 %v1081, %v1081
      %vm1083 = vcmask 257024
      %1084 = vst.msk [vmem:[%s389] sm:$0xf] %vm1083, %v1082
      %p1085 = scmp.lt.s32.totalorder %s24, 1
      %s1086 = scalar_select %p1085, %s24, 1
      %p1087 = scmp.lt.s32.totalorder %s25, 0
      %s1088 = scalar_select %p1087, %s25, 0
      %s1089 = sadd.s32 %s1088, %s1086
      %s1090 = smul.addr %s1089, 4
      %s1091 = scalar_lea.vmem %s9, %s1090
      // Predicated region
      $region57: #{transformer_lin_encoder.6} parent=55 // pred_check
        %p1092 = pneg %p258
      $region58: #{transformer_lin_encoder.6} parent=55 // pred_check_branch
        %1094 = sbr.rel (%p1092) target = $region60
      $region59: #{transformer_lin_encoder.6} parent=55 // pred_region
        _
      $region60: #{transformer_lin_encoder.6} parent=55 // pred_fallthru
        _
    $region56: #{transformer_lin_encoder.6} parent=5 // pred_fallthru
      _
    %p1095 = scmp.le.s32.totalorder 2, %s15
    // Predicated region
    $region61: #{transformer_lin_encoder.6} parent=5 // pred_check
      %p1096 = pneg %p1095
    $region62: #{transformer_lin_encoder.6} parent=5 // pred_check_branch
      %1098 = sbr.rel (%p1096) target = $region64
    $region63: #{transformer_lin_encoder.6} parent=5 // pred_region
      %s1099 = ssub.s32 %s15, 2
      // Predicated region
      $region65: #{transformer_lin_encoder.6} parent=63 // pred_check
        %p1100 = pneg %p264
      $region66: #{transformer_lin_encoder.6} parent=63 // pred_check_branch
        %1102 = sbr.rel (%p1100) target = $region68
      $region67: #{transformer_lin_encoder.6} parent=63 // pred_region
        %p1103 = scmp.lt.s32.totalorder %s26, 1
        %s1104 = scalar_select %p1103, %s26, 1
        %p1105 = scmp.lt.s32.totalorder %s27, 0
        %s1106 = scalar_select %p1105, %s27, 0
        %s1107 = sadd.s32 %s1106, %s1104
        %s1108 = smul.addr %s1107, 4
        %s1109 = scalar_lea.vmem %s9, %s1108
      $region68: #{transformer_lin_encoder.6} parent=63 // pred_fallthru
        _
    $region64: #{transformer_lin_encoder.6} parent=5 // pred_fallthru
      _
  $region6: #{transformer_lin_encoder.6} parent=0 // loop_footer
    %s19 = sadd.s32 1, %s15
  $region7: #{transformer_lin_encoder.6} parent=0 // loop_footer_branch
    %14 = sbr.rel target = $region3
  $region8: #{transformer_lin_encoder.6} parent=0 // loop_exit
    _

// kernel: transformer_lin_encoder.7
$region0: #{transformer_lin_encoder.7}
  #allocation0 [shape = 'u32[]', space=smem, size = 0x4, offset = 0x4, fixed_abs, tag = 'smem constant byte address 0x4 - core index']
  #allocation1 [shape = 'u32[144,128]{1,0:T(1,128)}', space=vmem, size = 0x12000, scoped, tag = 'internal scratch']
  #allocation2 [shape = 'f32[16,32]{1,0:T(8,128)}', space=vmem, size = 0x2000, scoped, tag = 'scratch operand']
  %s0 = inlined_call_operand.vmem [shape: bf16[16,32], index: 0, kind: input, shape index: {}]
  %s1 = inlined_call_operand.vmem [shape: bf16[32,64], index: 1, kind: input, shape index: {}]
  %s2 = inlined_call_operand.vmem [shape: f32[1,64], index: 2, kind: input, shape index: {}]
  %s3 = inlined_call_operand.vmem [shape: bf16[64,32], index: 3, kind: input, shape index: {}]
  %s4 = inlined_call_operand.vmem [shape: f32[1,32], index: 4, kind: input, shape index: {}]
  %s5 = inlined_call_operand.vmem [shape: f32[1,32], index: 5, kind: input, shape index: {}]
  %s6 = inlined_call_operand.vmem [shape: f32[1,32], index: 6, kind: input, shape index: {}]
  %s7 = inlined_call_operand.vmem [shape: bf16[16,32], index: 7, kind: output, shape index: {}]
  %s8 = sld [smem:[#allocation0]]
  $region46: #{transformer_lin_encoder.7} parent=0
    _
  %s10 = ssub.s32 1, %s8
  %s11 = scalar_select 0, %s10, %s8
  // Predicated region
  $region2: #{transformer_lin_encoder.7} parent=0 // pred_check
    _
  $region3: #{transformer_lin_encoder.7} parent=0 // pred_check_branch
    %13 = sbr.rel (0) target = $region5
  $region4: #{transformer_lin_encoder.7} parent=0 // pred_region
    _
  $region5: #{transformer_lin_encoder.7} parent=0 // pred_fallthru
    _
  // Predicated region
  $region6: #{transformer_lin_encoder.7} parent=0 // pred_check
    _
  $region7: #{transformer_lin_encoder.7} parent=0 // pred_check_branch
    %15 = sbr.rel (0) target = $region9
  $region8: #{transformer_lin_encoder.7} parent=0 // pred_region
    _
  $region9: #{transformer_lin_encoder.7} parent=0 // pred_fallthru
    _
  // Predicated region
  $region10: #{transformer_lin_encoder.7} parent=0 // pred_check
    _
  $region11: #{transformer_lin_encoder.7} parent=0 // pred_check_branch
    %17 = sbr.rel (0) target = $region13
  $region12: #{transformer_lin_encoder.7} parent=0 // pred_region
    _
  $region13: #{transformer_lin_encoder.7} parent=0 // pred_fallthru
    _
  // Predicated region
  $region14: #{transformer_lin_encoder.7} parent=0 // pred_check
    _
  $region15: #{transformer_lin_encoder.7} parent=0 // pred_check_branch
    %19 = sbr.rel (0) target = $region17
  $region16: #{transformer_lin_encoder.7} parent=0 // pred_region
    _
  $region17: #{transformer_lin_encoder.7} parent=0 // pred_fallthru
    _
  // Predicated region
  $region18: #{transformer_lin_encoder.7} parent=0 // pred_check
    _
  $region19: #{transformer_lin_encoder.7} parent=0 // pred_check_branch
    %21 = sbr.rel (0) target = $region21
  $region20: #{transformer_lin_encoder.7} parent=0 // pred_region
    _
  $region21: #{transformer_lin_encoder.7} parent=0 // pred_fallthru
    _
  // Predicated region
  $region22: #{transformer_lin_encoder.7} parent=0 // pred_check
    _
  $region23: #{transformer_lin_encoder.7} parent=0 // pred_check_branch
    %23 = sbr.rel (0) target = $region25
  $region24: #{transformer_lin_encoder.7} parent=0 // pred_region
    _
  $region25: #{transformer_lin_encoder.7} parent=0 // pred_fallthru
    _
  // Predicated region
  $region26: #{transformer_lin_encoder.7} parent=0 // pred_check
    _
  $region27: #{transformer_lin_encoder.7} parent=0 // pred_check_branch
    %25 = sbr.rel (0) target = $region29
  $region28: #{transformer_lin_encoder.7} parent=0 // pred_region
    _
  $region29: #{transformer_lin_encoder.7} parent=0 // pred_fallthru
    _
  %p27 = scmp.eq.s32.totalorder 0, 0
  // Predicated region
  $region30: #{transformer_lin_encoder.7} parent=0 // pred_check
    %p28 = pneg %p27
  $region31: #{transformer_lin_encoder.7} parent=0 // pred_check_branch
    %30 = sbr.rel (%p28) target = $region33
  $region32: #{transformer_lin_encoder.7} parent=0 // pred_region
    %vm31 = vcmask 261120
    %32 = vst.msk [vmem:[#allocation2] sm:$0xff] %vm31, 0.0
    %33 = vst.msk [vmem:[#allocation2 + $0x8] sm:$0xff] %vm31, 0.0
  $region33: #{transformer_lin_encoder.7} parent=0 // pred_fallthru
    _
  %v34 = vld [vmem:[%s0] sm:$0xf]
  %v35 = vld [vmem:[%s0 + $0x4] sm:$0xf]
  %v36 = vld [vmem:[%s1] sm:$0xf]
  %v37 = vld [vmem:[%s1 + $0x4] sm:$0xf]
  %v38 = vld [vmem:[%s1 + $0x8] sm:$0xf]
  %v39 = vld [vmem:[%s1 + $0xc] sm:$0xf]
  %v40 = vld [vmem:[%s2] sm:$0x1]
  %v42 = vlaneseq
  %v43 = vshrl.u32 %v42, 7
  %v44 = vsub.s32 0, %v43
  %v45 = vrot.slane %v40, %v44
  %v49 = vunpack.c.l.b16 %v34
  %v50 = vunpack.c.l.b16 %v35
  %v51 = vpack.c.b16 %v50, %v49
  %v56 = vunpack.c.l.b16 %v36
  %v57 = vunpack.c.l.b16 %v37
  %v58 = vunpack.c.l.b16 %v38
  %v59 = vunpack.c.l.b16 %v39
  %v60 = vpack.c.b16 %v57, %v56
  %v61 = vpack.c.b16 %v59, %v58
  %vm64 = vcmask 261120
  %v66 = vsel %vm64, %v51, 0
  %68 = vmatprep.subr.bf16.mxu0 0
  %69 = vmatpush1.bf16.msra.mxu0 %v60
  %70 = vmatprep.subr.bf16.mxu0 0
  %71 = vmatpush1.bf16.msra.mxu0 %v61
  %72 = vmatprep.subr.bf16.mxu0 0
  %73 = vmatpush1.bf16.msra.mxu0 0
  %74 = vmatprep.subr.bf16.mxu0 0
  %75 = vmatpush1.bf16.msra.mxu0 0
  %76 = vmatprep.subr.bf16.mxu0 0
  %77 = vmatpush1.bf16.msra.mxu0 0
  %78 = vmatprep.subr.bf16.mxu0 0
  %79 = vmatpush1.bf16.msra.mxu0 0
  %80 = vmatprep.subr.bf16.mxu0 0
  %81 = vmatpush1.bf16.msra.mxu0 0
  %82 = vmatprep.subr.bf16.mxu0 0
  %83 = vmatpush1.bf16.msra.mxu0 0
  %84 = vmatprep.subr.bf16.mxu0 0
  %85 = vmatpush1.bf16.msra.mxu0 0
  %86 = vmatprep.subr.bf16.mxu0 0
  %87 = vmatpush1.bf16.msra.mxu0 0
  %88 = vmatprep.subr.bf16.mxu0 0
  %89 = vmatpush1.bf16.msra.mxu0 0
  %90 = vmatprep.subr.bf16.mxu0 0
  %91 = vmatpush1.bf16.msra.mxu0 0
  %92 = vmatprep.subr.bf16.mxu0 0
  %93 = vmatpush1.bf16.msra.mxu0 0
  %94 = vmatprep.subr.bf16.mxu0 0
  %95 = vmatpush1.bf16.msra.mxu0 0
  %96 = vmatprep.subr.bf16.mxu0 0
  %97 = vmatpush1.bf16.msra.mxu0 0
  %98 = vmatprep.subr.bf16.mxu0 0
  %99 = vmatpush1.bf16.msra.mxu0 0
  %100 = vmatprep.mubr.bf16.mxu0 0
  %101 = vmatmul.mubr.bf16.gmra.mrb[0].mxu0 %v66
  %v102 = vpop.f32.mrb[0].mxu0
  %v103 = vadd.f32 %v45, %v102
  %v104 = vpop.f32.mrb[0].mxu0
  %v105 = vpop.f32.mrb[0].mxu0
  %v106 = vadd.f32 %v45, %v105
  %v107 = vpop.f32.mrb[0].mxu0
  %108 = vdwg.mxu0
  %v109 = vmax.f32 %v103, 0.0
  %v110 = vmax.f32 %v106, 0.0
  %v111 = vld [vmem:[#allocation2] sm:$0xff]
  %v112 = vld [vmem:[#allocation2 + $0x8] sm:$0xff]
  %v113 = vpack.c.bf16 %v110, %v109
  %v114 = vld [vmem:[%s3] sm:$0xf]
  %v115 = vld [vmem:[%s3 + $0x4] sm:$0xf]
  %v116 = vld [vmem:[%s3 + $0x8] sm:$0xf]
  %v117 = vld [vmem:[%s3 + $0xc] sm:$0xf]
  %v118 = vld [vmem:[%s3 + $0x10] sm:$0xf]
  %v119 = vld [vmem:[%s3 + $0x14] sm:$0xf]
  %v120 = vld [vmem:[%s3 + $0x18] sm:$0xf]
  %v121 = vld [vmem:[%s3 + $0x1c] sm:$0xf]
  %v130 = vunpack.c.l.b16 %v114
  %v131 = vunpack.c.l.b16 %v115
  %v132 = vunpack.c.l.b16 %v116
  %v133 = vunpack.c.l.b16 %v117
  %v134 = vunpack.c.l.b16 %v118
  %v135 = vunpack.c.l.b16 %v119
  %v136 = vunpack.c.l.b16 %v120
  %v137 = vunpack.c.l.b16 %v121
  %v138 = vpack.c.b16 %v131, %v130
  %v139 = vpack.c.b16 %v133, %v132
  %v140 = vpack.c.b16 %v135, %v134
  %v141 = vpack.c.b16 %v137, %v136
  %vm146 = vcmask 523264
  %v148 = vsel %vm146, %v113, 0
  %150 = vmatprep.subr.bf16.mxu0 0
  %151 = vmatpush1.bf16.msra.mxu0 %v138
  %152 = vmatprep.subr.bf16.mxu0 0
  %153 = vmatpush1.bf16.msra.mxu0 %v139
  %154 = vmatprep.subr.bf16.mxu0 0
  %155 = vmatpush1.bf16.msra.mxu0 %v140
  %156 = vmatprep.subr.bf16.mxu0 0
  %157 = vmatpush1.bf16.msra.mxu0 %v141
  %158 = vmatprep.subr.bf16.mxu0 0
  %159 = vmatpush1.bf16.msra.mxu0 0
  %160 = vmatprep.subr.bf16.mxu0 0
  %161 = vmatpush1.bf16.msra.mxu0 0
  %162 = vmatprep.subr.bf16.mxu0 0
  %163 = vmatpush1.bf16.msra.mxu0 0
  %164 = vmatprep.subr.bf16.mxu0 0
  %165 = vmatpush1.bf16.msra.mxu0 0
  %166 = vmatprep.subr.bf16.mxu0 0
  %167 = vmatpush1.bf16.msra.mxu0 0
  %168 = vmatprep.subr.bf16.mxu0 0
  %169 = vmatpush1.bf16.msra.mxu0 0
  %170 = vmatprep.subr.bf16.mxu0 0
  %171 = vmatpush1.bf16.msra.mxu0 0
  %172 = vmatprep.subr.bf16.mxu0 0
  %173 = vmatpush1.bf16.msra.mxu0 0
  %174 = vmatprep.subr.bf16.mxu0 0
  %175 = vmatpush1.bf16.msra.mxu0 0
  %176 = vmatprep.subr.bf16.mxu0 0
  %177 = vmatpush1.bf16.msra.mxu0 0
  %178 = vmatprep.subr.bf16.mxu0 0
  %179 = vmatpush1.bf16.msra.mxu0 0
  %180 = vmatprep.subr.bf16.mxu0 0
  %181 = vmatpush1.bf16.msra.mxu0 0
  %182 = vmatprep.mubr.bf16.mxu0 0
  %183 = vmatmul.mubr.bf16.gmra.mrb[0].mxu0 %v148
  %v184 = vpop.f32.mrb[0].mxu0
  %v185 = vadd.f32 0.0, %v184
  %v186 = vpop.f32.mrb[0].mxu0
  %v187 = vpop.f32.mrb[0].mxu0
  %v188 = vadd.f32 0.0, %v187
  %v189 = vpop.f32.mrb[0].mxu0
  %190 = vdwg.mxu0
  %v191 = vadd.f32 %v111, %v185
  %v192 = vadd.f32 %v112, %v188
  %193 = vst.msk [vmem:[#allocation2] sm:$0xff] %vm64, %v191
  %194 = vst.msk [vmem:[#allocation2 + $0x8] sm:$0xff] %vm64, %v192
  // Predicated region
  $region34: #{transformer_lin_encoder.7} parent=0 // pred_check
    %p195 = pneg %p27
  $region35: #{transformer_lin_encoder.7} parent=0 // pred_check_branch
    %197 = sbr.rel (%p195) target = $region37
  $region36: #{transformer_lin_encoder.7} parent=0 // pred_region
    %v198 = vld [vmem:[#allocation2] sm:$0xff]
    %v199 = vld [vmem:[#allocation2 + $0x8] sm:$0xff]
    %v200 = vld [vmem:[%s4] sm:$0x1]
    %v202 = vlaneseq
    %v203 = vshrl.u32 %v202, 7
    %v204 = vsub.s32 0, %v203
    %v205 = vrot.slane %v200, %v204
    %v207 = vadd.f32 %v198, %v205
    %v208 = vadd.f32 %v199, %v205
    %v209 = vld [vmem:[%s0] sm:$0xf]
    %v210 = vld [vmem:[%s0 + $0x4] sm:$0xf]
    %v211 = vunpack.c.l.bf16 %v209
    %v212 = vunpack.c.l.bf16 %v210
    %v213 = vadd.f32 %v207, %v211
    %v214 = vadd.f32 %v208, %v212
    %v215 = vsel %vm64, %v213, 0.0
    %216 = vadd.xlane.f32.xlu0 %v215
    %v217 = vpop.xlane.xlu0 %216
    %v218 = vsel %vm64, %v214, 0.0
    %219 = vadd.xlane.f32.xlu0 %v218
    %v220 = vpop.xlane.xlu0 %219
    %v221 = vrcp.pop 32.0
    %v222 = vmul.f32 %v217, %v221
    %v223 = vmul.f32 %v220, %v221
    %v224 = vsub.f32 %v213, %v222
    %v225 = vsub.f32 %v214, %v223
    %v226 = vmul.f32 %v224, %v224
    %v227 = vmul.f32 %v225, %v225
    %v228 = vsel %vm64, %v226, 0.0
    %229 = vadd.xlane.f32.xlu0 %v228
    %v230 = vpop.xlane.xlu0 %229
    %v231 = vsel %vm64, %v227, 0.0
    %232 = vadd.xlane.f32.xlu0 %v231
    %v233 = vpop.xlane.xlu0 %232
    %v234 = vmul.f32 %v230, %v221
    %v235 = vmul.f32 %v233, %v221
    %v236 = vadd.f32 %v234, 1e-05
    %v237 = vadd.f32 %v235, 1e-05
    %v238 = vrsqrt.pop %v236
    %v239 = vrsqrt.pop %v237
    %v240 = vmul.f32 %v224, %v238
    %v241 = vmul.f32 %v225, %v239
    %v242 = vld [vmem:[%s5] sm:$0x1]
    %v244 = vlaneseq
    %v245 = vshrl.u32 %v244, 7
    %v246 = vsub.s32 0, %v245
    %v247 = vrot.slane %v242, %v246
    %v249 = vmul.f32 %v240, %v247
    %v250 = vmul.f32 %v241, %v247
    %v251 = vld [vmem:[%s6] sm:$0x1]
    %v253 = vlaneseq
    %v254 = vshrl.u32 %v253, 7
    %v255 = vsub.s32 0, %v254
    %v256 = vrot.slane %v251, %v255
    %v258 = vadd.f32 %v249, %v256
    %v259 = vadd.f32 %v250, %v256
    %v260 = vpack.c.bf16 %v259, %v258
    %v262 = vunpack.c.l.b16 %v260
    %v263 = vunpack.c.h.b16 %v260
    %v264 = vpack.c.b16 %v262, %v262
    %v265 = vpack.c.b16 %v263, %v263
    %vm268 = vcmask 257024
    %269 = vst.msk [vmem:[%s7] sm:$0xf] %vm268, %v264
    %270 = vst.msk [vmem:[%s7 + $0x4] sm:$0xf] %vm268, %v265
  $region37: #{transformer_lin_encoder.7} parent=0 // pred_fallthru
    _
  // Predicated region
  $region38: #{transformer_lin_encoder.7} parent=0 // pred_check
    _
  $region39: #{transformer_lin_encoder.7} parent=0 // pred_check_branch
    %272 = sbr.rel (0) target = $region41
  $region40: #{transformer_lin_encoder.7} parent=0 // pred_region
    _
  $region41: #{transformer_lin_encoder.7} parent=0 // pred_fallthru
    _
  // Predicated region
  $region42: #{transformer_lin_encoder.7} parent=0 // pred_check
    _
  $region43: #{transformer_lin_encoder.7} parent=0 // pred_check_branch
    %274 = sbr.rel (0) target = $region45
  $region44: #{transformer_lin_encoder.7} parent=0 // pred_region
    _
  $region45: #{transformer_lin_encoder.7} parent=0 // pred_fallthru
    _

// kernel: transformer_lin_encoder.9
$region0: #{transformer_lin_encoder.9}
  #allocation0 [shape = 'u32[]', space=smem, size = 0x4, offset = 0x4, fixed_abs, tag = 'smem constant byte address 0x4 - core index']
  #allocation1 [shape = 'u32[144,128]{1,0:T(1,128)}', space=vmem, size = 0x12000, scoped, tag = 'internal scratch']
  #allocation2 [shape = 'f32[16,32]{1,0:T(8,128)}', space=vmem, size = 0x2000, scoped, tag = 'scratch operand']
  %s0 = inlined_call_operand.vmem [shape: bf16[16,32], index: 0, kind: input, shape index: {}]
  %s1 = inlined_call_operand.vmem [shape: bf16[32,64], index: 1, kind: input, shape index: {}]
  %s2 = inlined_call_operand.vmem [shape: f32[1,64], index: 2, kind: input, shape index: {}]
  %s3 = inlined_call_operand.vmem [shape: bf16[64,32], index: 3, kind: input, shape index: {}]
  %s4 = inlined_call_operand.vmem [shape: f32[1,32], index: 4, kind: input, shape index: {}]
  %s5 = inlined_call_operand.vmem [shape: f32[1,32], index: 5, kind: input, shape index: {}]
  %s6 = inlined_call_operand.vmem [shape: f32[1,32], index: 6, kind: input, shape index: {}]
  %s7 = inlined_call_operand.hbm [shape: f32[16,32], index: 7, kind: output, shape index: {}]
  %s8 = sld [smem:[#allocation0]]
  $region46: #{transformer_lin_encoder.9} parent=0
    _
  %s10 = ssub.s32 1, %s8
  %s11 = scalar_select 0, %s10, %s8
  $region1: #{transformer_lin_encoder.9} parent=0
    #allocation3 [shape = 'u8[8192]{0}', space=vmem, size = 0x2000, scoped, tag = 'output window, operand 0, single buffered']
    #allocation4 [shape = 's32[1]{0}', space=sflag, size = 0x4, scoped, tag = 'scoped memory for transformer_lin_encoder.9']
    %12 = vsyncpa [#allocation4], 0
    // Predicated region
    $region2: #{transformer_lin_encoder.9} parent=1 // pred_check
      _
    $region3: #{transformer_lin_encoder.9} parent=1 // pred_check_branch
      %14 = sbr.rel (0) target = $region5
    $region4: #{transformer_lin_encoder.9} parent=1 // pred_region
      _
    $region5: #{transformer_lin_encoder.9} parent=1 // pred_fallthru
      _
    // Predicated region
    $region6: #{transformer_lin_encoder.9} parent=1 // pred_check
      _
    $region7: #{transformer_lin_encoder.9} parent=1 // pred_check_branch
      %16 = sbr.rel (0) target = $region9
    $region8: #{transformer_lin_encoder.9} parent=1 // pred_region
      _
    $region9: #{transformer_lin_encoder.9} parent=1 // pred_fallthru
      _
    // Predicated region
    $region10: #{transformer_lin_encoder.9} parent=1 // pred_check
      _
    $region11: #{transformer_lin_encoder.9} parent=1 // pred_check_branch
      %18 = sbr.rel (0) target = $region13
    $region12: #{transformer_lin_encoder.9} parent=1 // pred_region
      _
    $region13: #{transformer_lin_encoder.9} parent=1 // pred_fallthru
      _
    // Predicated region
    $region14: #{transformer_lin_encoder.9} parent=1 // pred_check
      _
    $region15: #{transformer_lin_encoder.9} parent=1 // pred_check_branch
      %20 = sbr.rel (0) target = $region17
    $region16: #{transformer_lin_encoder.9} parent=1 // pred_region
      _
    $region17: #{transformer_lin_encoder.9} parent=1 // pred_fallthru
      _
    // Predicated region
    $region18: #{transformer_lin_encoder.9} parent=1 // pred_check
      _
    $region19: #{transformer_lin_encoder.9} parent=1 // pred_check_branch
      %22 = sbr.rel (0) target = $region21
    $region20: #{transformer_lin_encoder.9} parent=1 // pred_region
      _
    $region21: #{transformer_lin_encoder.9} parent=1 // pred_fallthru
      _
    // Predicated region
    $region22: #{transformer_lin_encoder.9} parent=1 // pred_check
      _
    $region23: #{transformer_lin_encoder.9} parent=1 // pred_check_branch
      %24 = sbr.rel (0) target = $region25
    $region24: #{transformer_lin_encoder.9} parent=1 // pred_region
      _
    $region25: #{transformer_lin_encoder.9} parent=1 // pred_fallthru
      _
    // Predicated region
    $region26: #{transformer_lin_encoder.9} parent=1 // pred_check
      _
    $region27: #{transformer_lin_encoder.9} parent=1 // pred_check_branch
      %26 = sbr.rel (0) target = $region29
    $region28: #{transformer_lin_encoder.9} parent=1 // pred_region
      _
    $region29: #{transformer_lin_encoder.9} parent=1 // pred_fallthru
      _
    %p28 = scmp.eq.s32.totalorder 0, 0
    // Predicated region
    $region30: #{transformer_lin_encoder.9} parent=1 // pred_check
      %p29 = pneg %p28
    $region31: #{transformer_lin_encoder.9} parent=1 // pred_check_branch
      %31 = sbr.rel (%p29) target = $region33
    $region32: #{transformer_lin_encoder.9} parent=1 // pred_region
      %vm32 = vcmask 261120
      %33 = vst.msk [vmem:[#allocation2] sm:$0xff] %vm32, 0.0
      %34 = vst.msk [vmem:[#allocation2 + $0x8] sm:$0xff] %vm32, 0.0
    $region33: #{transformer_lin_encoder.9} parent=1 // pred_fallthru
      _
    %v35 = vld [vmem:[%s0] sm:$0xf]
    %v36 = vld [vmem:[%s0 + $0x4] sm:$0xf]
    %v37 = vld [vmem:[%s1] sm:$0xf]
    %v38 = vld [vmem:[%s1 + $0x4] sm:$0xf]
    %v39 = vld [vmem:[%s1 + $0x8] sm:$0xf]
    %v40 = vld [vmem:[%s1 + $0xc] sm:$0xf]
    %v41 = vld [vmem:[%s2] sm:$0x1]
    %v43 = vlaneseq
    %v44 = vshrl.u32 %v43, 7
    %v45 = vsub.s32 0, %v44
    %v46 = vrot.slane %v41, %v45
    %v50 = vunpack.c.l.b16 %v35
    %v51 = vunpack.c.l.b16 %v36
    %v52 = vpack.c.b16 %v51, %v50
    %v57 = vunpack.c.l.b16 %v37
    %v58 = vunpack.c.l.b16 %v38
    %v59 = vunpack.c.l.b16 %v39
    %v60 = vunpack.c.l.b16 %v40
    %v61 = vpack.c.b16 %v58, %v57
    %v62 = vpack.c.b16 %v60, %v59
    %vm65 = vcmask 261120
    %v67 = vsel %vm65, %v52, 0
    %69 = vmatprep.subr.bf16.mxu0 0
    %70 = vmatpush1.bf16.msra.mxu0 %v61
    %71 = vmatprep.subr.bf16.mxu0 0
    %72 = vmatpush1.bf16.msra.mxu0 %v62
    %73 = vmatprep.subr.bf16.mxu0 0
    %74 = vmatpush1.bf16.msra.mxu0 0
    %75 = vmatprep.subr.bf16.mxu0 0
    %76 = vmatpush1.bf16.msra.mxu0 0
    %77 = vmatprep.subr.bf16.mxu0 0
    %78 = vmatpush1.bf16.msra.mxu0 0
    %79 = vmatprep.subr.bf16.mxu0 0
    %80 = vmatpush1.bf16.msra.mxu0 0
    %81 = vmatprep.subr.bf16.mxu0 0
    %82 = vmatpush1.bf16.msra.mxu0 0
    %83 = vmatprep.subr.bf16.mxu0 0
    %84 = vmatpush1.bf16.msra.mxu0 0
    %85 = vmatprep.subr.bf16.mxu0 0
    %86 = vmatpush1.bf16.msra.mxu0 0
    %87 = vmatprep.subr.bf16.mxu0 0
    %88 = vmatpush1.bf16.msra.mxu0 0
    %89 = vmatprep.subr.bf16.mxu0 0
    %90 = vmatpush1.bf16.msra.mxu0 0
    %91 = vmatprep.subr.bf16.mxu0 0
    %92 = vmatpush1.bf16.msra.mxu0 0
    %93 = vmatprep.subr.bf16.mxu0 0
    %94 = vmatpush1.bf16.msra.mxu0 0
    %95 = vmatprep.subr.bf16.mxu0 0
    %96 = vmatpush1.bf16.msra.mxu0 0
    %97 = vmatprep.subr.bf16.mxu0 0
    %98 = vmatpush1.bf16.msra.mxu0 0
    %99 = vmatprep.subr.bf16.mxu0 0
    %100 = vmatpush1.bf16.msra.mxu0 0
    %101 = vmatprep.mubr.bf16.mxu0 0
    %102 = vmatmul.mubr.bf16.gmra.mrb[0].mxu0 %v67
    %v103 = vpop.f32.mrb[0].mxu0
    %v104 = vadd.f32 %v46, %v103
    %v105 = vpop.f32.mrb[0].mxu0
    %v106 = vpop.f32.mrb[0].mxu0
    %v107 = vadd.f32 %v46, %v106
    %v108 = vpop.f32.mrb[0].mxu0
    %109 = vdwg.mxu0
    %v110 = vmax.f32 %v104, 0.0
    %v111 = vmax.f32 %v107, 0.0
    %v112 = vld [vmem:[#allocation2] sm:$0xff]
    %v113 = vld [vmem:[#allocation2 + $0x8] sm:$0xff]
    %v114 = vpack.c.bf16 %v111, %v110
    %v115 = vld [vmem:[%s3] sm:$0xf]
    %v116 = vld [vmem:[%s3 + $0x4] sm:$0xf]
    %v117 = vld [vmem:[%s3 + $0x8] sm:$0xf]
    %v118 = vld [vmem:[%s3 + $0xc] sm:$0xf]
    %v119 = vld [vmem:[%s3 + $0x10] sm:$0xf]
    %v120 = vld [vmem:[%s3 + $0x14] sm:$0xf]
    %v121 = vld [vmem:[%s3 + $0x18] sm:$0xf]
    %v122 = vld [vmem:[%s3 + $0x1c] sm:$0xf]
    %v131 = vunpack.c.l.b16 %v115
    %v132 = vunpack.c.l.b16 %v116
    %v133 = vunpack.c.l.b16 %v117
    %v134 = vunpack.c.l.b16 %v118
    %v135 = vunpack.c.l.b16 %v119
    %v136 = vunpack.c.l.b16 %v120
    %v137 = vunpack.c.l.b16 %v121
    %v138 = vunpack.c.l.b16 %v122
    %v139 = vpack.c.b16 %v132, %v131
    %v140 = vpack.c.b16 %v134, %v133
    %v141 = vpack.c.b16 %v136, %v135
    %v142 = vpack.c.b16 %v138, %v137
    %vm147 = vcmask 523264
    %v149 = vsel %vm147, %v114, 0
    %151 = vmatprep.subr.bf16.mxu0 0
    %152 = vmatpush1.bf16.msra.mxu0 %v139
    %153 = vmatprep.subr.bf16.mxu0 0
    %154 = vmatpush1.bf16.msra.mxu0 %v140
    %155 = vmatprep.subr.bf16.mxu0 0
    %156 = vmatpush1.bf16.msra.mxu0 %v141
    %157 = vmatprep.subr.bf16.mxu0 0
    %158 = vmatpush1.bf16.msra.mxu0 %v142
    %159 = vmatprep.subr.bf16.mxu0 0
    %160 = vmatpush1.bf16.msra.mxu0 0
    %161 = vmatprep.subr.bf16.mxu0 0
    %162 = vmatpush1.bf16.msra.mxu0 0
    %163 = vmatprep.subr.bf16.mxu0 0
    %164 = vmatpush1.bf16.msra.mxu0 0
    %165 = vmatprep.subr.bf16.mxu0 0
    %166 = vmatpush1.bf16.msra.mxu0 0
    %167 = vmatprep.subr.bf16.mxu0 0
    %168 = vmatpush1.bf16.msra.mxu0 0
    %169 = vmatprep.subr.bf16.mxu0 0
    %170 = vmatpush1.bf16.msra.mxu0 0
    %171 = vmatprep.subr.bf16.mxu0 0
    %172 = vmatpush1.bf16.msra.mxu0 0
    %173 = vmatprep.subr.bf16.mxu0 0
    %174 = vmatpush1.bf16.msra.mxu0 0
    %175 = vmatprep.subr.bf16.mxu0 0
    %176 = vmatpush1.bf16.msra.mxu0 0
    %177 = vmatprep.subr.bf16.mxu0 0
    %178 = vmatpush1.bf16.msra.mxu0 0
    %179 = vmatprep.subr.bf16.mxu0 0
    %180 = vmatpush1.bf16.msra.mxu0 0
    %181 = vmatprep.subr.bf16.mxu0 0
    %182 = vmatpush1.bf16.msra.mxu0 0
    %183 = vmatprep.mubr.bf16.mxu0 0
    %184 = vmatmul.mubr.bf16.gmra.mrb[0].mxu0 %v149
    %v185 = vpop.f32.mrb[0].mxu0
    %v186 = vadd.f32 0.0, %v185
    %v187 = vpop.f32.mrb[0].mxu0
    %v188 = vpop.f32.mrb[0].mxu0
    %v189 = vadd.f32 0.0, %v188
    %v190 = vpop.f32.mrb[0].mxu0
    %191 = vdwg.mxu0
    %v192 = vadd.f32 %v112, %v186
    %v193 = vadd.f32 %v113, %v189
    %194 = vst.msk [vmem:[#allocation2] sm:$0xff] %vm65, %v192
    %195 = vst.msk [vmem:[#allocation2 + $0x8] sm:$0xff] %vm65, %v193
    // Predicated region
    $region34: #{transformer_lin_encoder.9} parent=1 // pred_check
      %p196 = pneg %p28
    $region35: #{transformer_lin_encoder.9} parent=1 // pred_check_branch
      %198 = sbr.rel (%p196) target = $region37
    $region36: #{transformer_lin_encoder.9} parent=1 // pred_region
      %v199 = vld [vmem:[#allocation2] sm:$0xff]
      %v200 = vld [vmem:[#allocation2 + $0x8] sm:$0xff]
      %v201 = vld [vmem:[%s4] sm:$0x1]
      %v203 = vlaneseq
      %v204 = vshrl.u32 %v203, 7
      %v205 = vsub.s32 0, %v204
      %v206 = vrot.slane %v201, %v205
      %v208 = vadd.f32 %v199, %v206
      %v209 = vadd.f32 %v200, %v206
      %v210 = vld [vmem:[%s0] sm:$0xf]
      %v211 = vld [vmem:[%s0 + $0x4] sm:$0xf]
      %v212 = vunpack.c.l.bf16 %v210
      %v213 = vunpack.c.l.bf16 %v211
      %v214 = vadd.f32 %v208, %v212
      %v215 = vadd.f32 %v209, %v213
      %v216 = vsel %vm65, %v214, 0.0
      %217 = vadd.xlane.f32.xlu0 %v216
      %v218 = vpop.xlane.xlu0 %217
      %v219 = vsel %vm65, %v215, 0.0
      %220 = vadd.xlane.f32.xlu0 %v219
      %v221 = vpop.xlane.xlu0 %220
      %v222 = vrcp.pop 32.0
      %v223 = vmul.f32 %v218, %v222
      %v224 = vmul.f32 %v221, %v222
      %v225 = vsub.f32 %v214, %v223
      %v226 = vsub.f32 %v215, %v224
      %v227 = vmul.f32 %v225, %v225
      %v228 = vmul.f32 %v226, %v226
      %v229 = vsel %vm65, %v227, 0.0
      %230 = vadd.xlane.f32.xlu0 %v229
      %v231 = vpop.xlane.xlu0 %230
      %v232 = vsel %vm65, %v228, 0.0
      %233 = vadd.xlane.f32.xlu0 %v232
      %v234 = vpop.xlane.xlu0 %233
      %v235 = vmul.f32 %v231, %v222
      %v236 = vmul.f32 %v234, %v222
      %v237 = vadd.f32 %v235, 1e-05
      %v238 = vadd.f32 %v236, 1e-05
      %v239 = vrsqrt.pop %v237
      %v240 = vrsqrt.pop %v238
      %v241 = vmul.f32 %v225, %v239
      %v242 = vmul.f32 %v226, %v240
      %v243 = vld [vmem:[%s5] sm:$0x1]
      %v245 = vlaneseq
      %v246 = vshrl.u32 %v245, 7
      %v247 = vsub.s32 0, %v246
      %v248 = vrot.slane %v243, %v247
      %v250 = vmul.f32 %v241, %v248
      %v251 = vmul.f32 %v242, %v248
      %v252 = vld [vmem:[%s6] sm:$0x1]
      %v254 = vlaneseq
      %v255 = vshrl.u32 %v254, 7
      %v256 = vsub.s32 0, %v255
      %v257 = vrot.slane %v252, %v256
      %v259 = vadd.f32 %v250, %v257
      %v260 = vadd.f32 %v251, %v257
      %261 = vst.msk [vmem:[#allocation3] sm:$0xff] %vm65, %v259
      %262 = vst.msk [vmem:[#allocation3 + $0x8] sm:$0xff] %vm65, %v260
    $region37: #{transformer_lin_encoder.9} parent=1 // pred_fallthru
      _
    // Predicated region
    $region38: #{transformer_lin_encoder.9} parent=1 // pred_check
      _
    $region39: #{transformer_lin_encoder.9} parent=1 // pred_check_branch
      %264 = sbr.rel (0) target = $region41
    $region40: #{transformer_lin_encoder.9} parent=1 // pred_region
      %s266 = ssub.s32 256, 256
      %267 = vsyncadd [#allocation4], %s266
      %s268 = sshll.u32 [#allocation3], 4
      %s269 = int_to_ptr.vmem [resolvable:$true] %s268
      %274 = dma.vmem_to_hbm [thread:$0]  %s269, 256, %s7, [#allocation4], 128, 128, 8
    $region41: #{transformer_lin_encoder.9} parent=1 // pred_fallthru
      _
    // Predicated region
    $region42: #{transformer_lin_encoder.9} parent=1 // pred_check
      _
    $region43: #{transformer_lin_encoder.9} parent=1 // pred_check_branch
      %276 = sbr.rel (0) target = $region45
    $region44: #{transformer_lin_encoder.9} parent=1 // pred_region
      %277 = dma.done [#allocation4], 256
    $region45: #{transformer_lin_encoder.9} parent=1 // pred_fallthru
      _
    %278 = vsyncpa [#allocation4], 1

</llo_original>
